<compile_context>
chip_gen: v7x
topology: tpu7x:2x2x1
jax: 0.10.0
libtpu: 0.0.40
codegen_flags: <defaults>
</compile_context>

<pallas_src>
import functools

import jax
import jax.numpy as jnp
import numpy as np
from jax import lax
from jax.experimental import pallas as pl
from jax.experimental.pallas import tpu as pltpu


def _round_up(x, m):
    return ((x + m - 1) // m) * m


def _bottleneck_kernel(x_top_ref, x_mid_ref, x_bot_ref,
                       w1_ref, b1_ref, w2_ref, b2_ref, w3_ref, b3_ref,
                       out_ref, pad_ref, col_ref, *, dilation, pad_left):
    """One (image, row-band) pair per grid step.

    x_top_ref : (1, d, W, Cin)     f32   halo rows above the band (clamped)
    x_mid_ref : (1, TB, W, Cin)    f32   the band itself (also the residual)
    x_bot_ref : (1, d, W, Cin)     f32   halo rows below the band (clamped)
    w1_ref    : (Cin, P)           bf16  (BN1 scale folded in)
    b1_ref    : (1, P)             f32   (BN1 shift)
    w2_ref    : (9P, P)            bf16  (BN2 scale folded in), tap-major rows
    b2_ref    : (1, P)             f32
    w3_ref    : (P, 4P)            bf16  (BN3 scale folded in)
    b3_ref    : (1, 4P)            f32
    out_ref   : (1, TB, W, 4P)     f32   pre-ReLU residual sum (PyTorch `out`)
    pad_ref   : (TB+2d, L+W+d, P)  bf16  zero-halo conv2 input scratch
    col_ref   : (TB*W, 9P)         bf16  im2col scratch (one K=9P matmul)
    """
    _, TB, W, Cin = x_mid_ref.shape
    P = w1_ref.shape[1]
    Cout = w3_ref.shape[1]
    d = dilation
    left = pad_left
    rows_p = TB + 2 * d
    cols_p = left + W + d

    b = pl.program_id(1)
    nb = pl.num_programs(1)

    w1 = w1_ref[...]
    b1 = b1_ref[...]

    def conv1(x4d, nrows):
        xb = x4d.reshape(nrows * W, Cin).astype(jnp.bfloat16)
        h = jnp.dot(xb, w1, preferred_element_type=jnp.float32)
        h = jnp.maximum(h + b1, 0.0)
        return h.reshape(nrows, W, P).astype(jnp.bfloat16)

    # ---- conv1 (1x1) + BN1 (scale folded) + ReLU on band + halo rows, ------
    # ---- written into the zero-padded conv2 input scratch ------------------
    # Column halo is zero padding; re-zero every step (VMEM scratch contents
    # are per-core and not guaranteed across steps).
    pad_ref[:, 0:left, :] = jnp.zeros((rows_p, left, P), jnp.bfloat16)
    pad_ref[:, left + W:cols_p, :] = jnp.zeros((rows_p, d, P), jnp.bfloat16)

    pad_ref[d:d + TB, left:left + W, :] = conv1(x_mid_ref[...], TB)
    pad_ref[0:d, left:left + W, :] = conv1(x_top_ref[...], d)
    pad_ref[d + TB:rows_p, left:left + W, :] = conv1(x_bot_ref[...], d)

    # Halo rows that fall outside the image are zero padding (padding=dilation).
    @pl.when(b == 0)
    def _():
        pad_ref[0:d, left:left + W, :] = jnp.zeros((d, W, P), jnp.bfloat16)

    @pl.when(b == nb - 1)
    def _():
        pad_ref[d + TB:rows_p, left:left + W, :] = jnp.zeros((d, W, P),
                                                             jnp.bfloat16)

    # ---- conv2 (3x3, dilation=d) as ONE K=9P matmul via im2col -------------
    for kh in range(3):
        for kw in range(3):
            t = kh * 3 + kw
            c0 = left - d + kw * d
            col_ref[:, t * P:(t + 1) * P] = (
                pad_ref[kh * d:kh * d + TB, c0:c0 + W, :].reshape(TB * W, P))
    h2 = jnp.dot(col_ref[...], w2_ref[...], preferred_element_type=jnp.float32)
    h2 = jnp.maximum(h2 + b2_ref[...], 0.0).astype(jnp.bfloat16)

    # ---- conv3 (1x1) + BN3 (scale folded) + residual add -------------------
    out = jnp.dot(h2, w3_ref[...], preferred_element_type=jnp.float32)
    out = out + b3_ref[...]
    # Residual read at the point of use (keeps the f32 live range short).
    out = out + x_mid_ref[0].reshape(TB * W, Cin)
    out_ref[0] = out.reshape(TB, W, Cout)


def _pick_band_rows(H, W, Cin, P, Cout, d, vmem_cap):
    """Largest row-band TB (dividing H, multiple of d) whose per-step resident
    blocks fit a conservative slice of VMEM; prefer >= 2 bands per image so the
    auto-pipeline has steps to overlap."""
    budget = 0.35 * vmem_cap
    left = _round_up(d, 8)

    def band_bytes(tb):
        return (2 * tb * W * Cin * 4                       # x band block (x2 buf)
                + 2 * 2 * d * W * Cin * 4                  # two halo blocks
                + 2 * tb * W * Cout * 4                    # out block (x2 buf)
                + (tb + 2 * d) * (left + W + d) * P * 2    # pad scratch bf16
                + tb * W * 9 * P * 2                       # im2col scratch bf16
                + 2 * 2 * (Cin * P + 9 * P * P + P * Cout) # bf16 weights
                + 2 * 4 * (P + P + Cout))                  # f32 shifts

    cands = [t for t in range(H, 0, -1)
             if H % t == 0 and t % d == 0 and band_bytes(t) <= budget]
    if not cands:
        raise ValueError("no row-band size fits VMEM; band W / shrink P too")
    for t in cands:                       # descending
        if t <= max(H // 2, d):           # prefer >= 2 bands when possible
            return t
    return cands[-1]


@functools.partial(jax.jit, static_argnames=("dilation",))
def bottleneck_forward(x, params, *, dilation):
    """x: NCHW array or a tuple (residual, _) like the PyTorch forward.
    Returns (act, out) in NCHW, matching the PyTorch module."""
    if isinstance(x, tuple):
        x = x[0]
    (w1, s1, b1, w2, s2, b2, w3, s3, b3) = params

    N, Cin, H, W = x.shape
    P = w1.shape[1]
    Cout = 4 * P
    assert Cin == Cout, "no-downsample Bottleneck requires inplanes == planes*4"
    d = dilation
    assert H % d == 0, "H must be a multiple of the dilation for halo tiling"

    # Fold the frozen BatchNorm scales into the conv weights (bf16 for MXU).
    # TODO(synk): if accuracy is tight, keep the scale as a post-matmul f32 mul.
    w1f = (w1 * s1).astype(jnp.bfloat16)                              # (Cin, P)
    w2f = (w2 * s2.reshape(1, 1, P)).reshape(9 * P, P).astype(jnp.bfloat16)
    w3f = (w3 * s3).astype(jnp.bfloat16)                              # (P, 4P)
    b1f = b1.astype(jnp.float32)
    b2f = b2.astype(jnp.float32)
    b3f = b3.astype(jnp.float32)

    # Per-generation VMEM budget (v5e/v6e: 128 MiB, v7x: 64 MiB per core).
    try:
        vmem_cap = int(pltpu.get_tpu_info().vmem_capacity_bytes)
    except Exception:
        vmem_cap = 64 * 1024 * 1024
    vmem_limit = int(0.8 * vmem_cap)

    TB = _pick_band_rows(H, W, Cin, P, Cout, d, vmem_cap)
    nb = H // TB
    hpb = TB // d                   # halo blocks (of d rows) per band
    last_halo_blk = H // d - 1
    left = _round_up(d, 8)          # over-allocated left column halo (alignment)

    # NCHW -> NHWC so channels sit on the lane dim (relu fuses into the
    # output transpose under jit; a full-NHWC model would skip both).
    x_nhwc = jnp.transpose(x, (0, 2, 3, 1))

    kernel = functools.partial(_bottleneck_kernel, dilation=d, pad_left=left)
    const2 = lambda n, b: (0, 0)

    out_nhwc = pl.pallas_call(
        kernel,
        out_shape=jax.ShapeDtypeStruct((N, H, W, Cout), jnp.float32),
        grid=(N, nb),
        in_specs=[
            # halo rows above the band (block index clamped at the top edge)
            pl.BlockSpec((1, d, W, Cin),
                         lambda n, b: (n, jnp.maximum(b * hpb - 1, 0), 0, 0)),
            # the band itself (also the residual)
            pl.BlockSpec((1, TB, W, Cin), lambda n, b: (n, b, 0, 0)),
            # halo rows below the band (clamped at the bottom edge)
            pl.BlockSpec((1, d, W, Cin),
                         lambda n, b: (n, jnp.minimum((b + 1) * hpb,
                                                      last_halo_blk), 0, 0)),
            pl.BlockSpec((Cin, P), const2),
            pl.BlockSpec((1, P), const2),
            pl.BlockSpec((9 * P, P), const2),
            pl.BlockSpec((1, P), const2),
            pl.BlockSpec((P, Cout), const2),
            pl.BlockSpec((1, Cout), const2),
        ],
        out_specs=pl.BlockSpec((1, TB, W, Cout), lambda n, b: (n, b, 0, 0)),
        scratch_shapes=[
            pltpu.VMEM((TB + 2 * d, left + W + d, P), jnp.bfloat16),
            pltpu.VMEM((TB * W, 9 * P), jnp.bfloat16),
        ],
        compiler_params=pltpu.CompilerParams(
            dimension_semantics=("parallel", "parallel"),
            vmem_limit_bytes=vmem_limit),
    )(x_nhwc, x_nhwc, x_nhwc, w1f, b1f, w2f, b2f, w3f, b3f)

    out = jnp.transpose(out_nhwc, (0, 3, 1, 2))      # back to NCHW
    act = jnp.maximum(out, 0.0)                      # relu(out), fused by XLA
    return act, out


# ---------------------------------------------------------------------------
# Parameter construction (deterministic) and a pure-JAX reference for checking
# ---------------------------------------------------------------------------
def make_params(key, inplanes, planes):
    eps = 1e-5
    keys = jax.random.split(key, 15)

    def bn(kg, kb, km, kv, c):
        gamma = jax.random.uniform(kg, (c,), jnp.float32, 0.5, 1.5)
        beta = jax.random.normal(kb, (c,), jnp.float32) * 0.1
        mean = jax.random.normal(km, (c,), jnp.float32) * 0.1
        var = jax.random.uniform(kv, (c,), jnp.float32, 0.5, 1.5)
        scale = gamma / jnp.sqrt(var + eps)
        shift = beta - mean * scale
        return scale.reshape(1, c), shift.reshape(1, c)

    w1 = jax.random.normal(keys[0], (inplanes, planes), jnp.float32) * 0.1
    s1, b1 = bn(keys[1], keys[2], keys[3], keys[4], planes)
    w2 = jax.random.normal(keys[5], (9, planes, planes), jnp.float32) * 0.1
    s2, b2 = bn(keys[6], keys[7], keys[8], keys[9], planes)
    w3 = jax.random.normal(keys[10], (planes, planes * 4), jnp.float32) * 0.1
    s3, b3 = bn(keys[11], keys[12], keys[13], keys[14], planes * 4)
    return (w1, s1, b1, w2, s2, b2, w3, s3, b3)


def reference_forward(x, params, *, dilation):
    (w1, s1, b1, w2, s2, b2, w3, s3, b3) = params
    P = w1.shape[1]

    def conv(x, w_oihw, dil, pad):
        return lax.conv_general_dilated(
            x, w_oihw, window_strides=(1, 1),
            padding=[(pad, pad), (pad, pad)], rhs_dilation=(dil, dil),
            dimension_numbers=('NCHW', 'OIHW', 'NCHW'))

    def bn_nchw(x, scale, shift):
        return x * scale.reshape(1, -1, 1, 1) + shift.reshape(1, -1, 1, 1)

    w1_oihw = jnp.transpose(w1)[:, :, None, None]                       # (P, Cin, 1, 1)
    w2_oihw = jnp.transpose(w2.reshape(3, 3, P, P), (3, 2, 0, 1))       # (P, P, 3, 3)
    w3_oihw = jnp.transpose(w3)[:, :, None, None]                       # (4P, P, 1, 1)

    h = jax.nn.relu(bn_nchw(conv(x, w1_oihw, 1, 0), s1[0], b1[0]))
    h = jax.nn.relu(bn_nchw(conv(h, w2_oihw, dilation, dilation), s2[0], b2[0]))
    h = bn_nchw(conv(h, w3_oihw, 1, 0), s3[0], b3[0])
    out = h + x
    return jax.nn.relu(out), out


if __name__ == "__main__":
    N, inplanes, planes, H, W = 2, 16, 4, 16, 16
    dilation = 2

    key = jax.random.PRNGKey(0)
    kx, kp = jax.random.split(key)
    x = jax.random.normal(kx, (N, inplanes, H, W), jnp.float32)
    params = make_params(kp, inplanes, planes)

    act, out = bottleneck_forward(x, params, dilation=dilation)
    act = jax.block_until_ready(act)
    out = jax.block_until_ready(out)

    act_exp, out_exp = reference_forward(x, params, dilation=dilation)
    # bf16 matmul inputs -> slightly looser tolerance than a pure-f32 check.
    np.testing.assert_allclose(np.asarray(out), np.asarray(out_exp),
                               rtol=2e-2, atol=2e-2)
    np.testing.assert_allclose(np.asarray(act), np.asarray(act_exp),
                               rtol=2e-2, atol=2e-2)

    print("KERNEL_OK")
</pallas_src>

<mosaic_0001>
module attributes {stable_mosaic.version = 11 : i64} {
  func.func @_bottleneck_kernel(%arg0: i32, %arg1: i32, %arg2: memref<1x2x16x16xf32, #tpu.memory_space<vmem>>, %arg3: memref<1x8x16x16xf32, #tpu.memory_space<vmem>>, %arg4: memref<1x2x16x16xf32, #tpu.memory_space<vmem>>, %arg5: memref<16x4xbf16, #tpu.memory_space<vmem>>, %arg6: memref<1x4xf32, #tpu.memory_space<vmem>>, %arg7: memref<36x4xbf16, #tpu.memory_space<vmem>>, %arg8: memref<1x4xf32, #tpu.memory_space<vmem>>, %arg9: memref<4x16xbf16, #tpu.memory_space<vmem>>, %arg10: memref<1x16xf32, #tpu.memory_space<vmem>>, %arg11: memref<1x8x16x16xf32, #tpu.memory_space<vmem>>, %arg12: memref<12x26x4xbf16, #tpu.memory_space<vmem>>, %arg13: memref<128x36xbf16, #tpu.memory_space<vmem>>) attributes {dimension_semantics = [#tpu.dimension_semantics<parallel>, #tpu.dimension_semantics<parallel>], iteration_bounds = array<i64: 2, 2>, scalar_prefetch = 0 : i64, scratch_operands = 2 : i64, tpu.core_type = #tpu.core_type<tc>, window_params = [{transform_indices = @transform_0, window_bounds = array<i64: 1, 2, 16, 16>}, {transform_indices = @transform_1, window_bounds = array<i64: 1, 8, 16, 16>}, {transform_indices = @transform_2, window_bounds = array<i64: 1, 2, 16, 16>}, {pipeline_mode = #tpu.pipeline_mode<synchronous>, transform_indices = @transform_3, window_bounds = array<i64: 16, 4>}, {pipeline_mode = #tpu.pipeline_mode<synchronous>, transform_indices = @transform_4, window_bounds = array<i64: 1, 4>}, {pipeline_mode = #tpu.pipeline_mode<synchronous>, transform_indices = @transform_5, window_bounds = array<i64: 36, 4>}, {pipeline_mode = #tpu.pipeline_mode<synchronous>, transform_indices = @transform_6, window_bounds = array<i64: 1, 4>}, {pipeline_mode = #tpu.pipeline_mode<synchronous>, transform_indices = @transform_7, window_bounds = array<i64: 4, 16>}, {pipeline_mode = #tpu.pipeline_mode<synchronous>, transform_indices = @transform_8, window_bounds = array<i64: 1, 16>}, {transform_indices = @transform_9, window_bounds = array<i64: 1, 8, 16, 16>}]} {
    %c0 = arith.constant 0 : index
    %c0_0 = arith.constant 0 : index
    %0 = vector.load %arg5[%c0, %c0_0] : memref<16x4xbf16, #tpu.memory_space<vmem>>, vector<16x4xbf16>
    %c0_1 = arith.constant 0 : index
    %c0_2 = arith.constant 0 : index
    %1 = vector.load %arg6[%c0_1, %c0_2] : memref<1x4xf32, #tpu.memory_space<vmem>>, vector<1x4xf32>
    %cst = arith.constant 0.000000e+00 : bf16
    %2 = vector.broadcast %cst : bf16 to vector<12x8x4xbf16>
    %c0_3 = arith.constant 0 : index
    %c0_4 = arith.constant 0 : index
    %c0_5 = arith.constant 0 : index
    %3 = vector.load %arg12[%c0_3, %c0_4, %c0_5] : memref<12x26x4xbf16, #tpu.memory_space<vmem>>, vector<12x8x4xbf16>
    tpu.vector_store %arg12[%c0_3, %c0_4, %c0_5], %2 {strides = array<i32>} : memref<12x26x4xbf16, #tpu.memory_space<vmem>>, vector<12x8x4xbf16>,
    %cst_6 = arith.constant 0.000000e+00 : bf16
    %4 = vector.broadcast %cst_6 : bf16 to vector<12x2x4xbf16>
    %c0_7 = arith.constant 0 : index
    %c24 = arith.constant 24 : index
    %c0_8 = arith.constant 0 : index
    %5 = vector.load %arg12[%c0_7, %c24, %c0_8] : memref<12x26x4xbf16, #tpu.memory_space<vmem>>, vector<12x2x4xbf16>
    tpu.vector_store %arg12[%c0_7, %c24, %c0_8], %4 {strides = array<i32>} : memref<12x26x4xbf16, #tpu.memory_space<vmem>>, vector<12x2x4xbf16>,
    %c0_9 = arith.constant 0 : index
    %c0_10 = arith.constant 0 : index
    %c0_11 = arith.constant 0 : index
    %c0_12 = arith.constant 0 : index
    %6 = vector.load %arg3[%c0_9, %c0_10, %c0_11, %c0_12] : memref<1x8x16x16xf32, #tpu.memory_space<vmem>>, vector<1x8x16x16xf32>
    %7 = vector.shape_cast %6 : vector<1x8x16x16xf32> to vector<128x16xf32>
    %8 = arith.truncf %7 : vector<128x16xf32> to vector<128x16xbf16>
    %cst_13 = arith.constant dense<0.000000e+00> : vector<128x4xf32>
    %9 = tpu.matmul %8, %0, %cst_13 {dimension_numbers = #tpu.dot_dimension_numbers<[1], [0], [0], [1], [0, 0, 1, 1], [], []>} : vector<128x16xbf16>, vector<16x4xbf16>, vector<128x4xf32> -> vector<128x4xf32>
    %10 = vector.broadcast %1 : vector<1x4xf32> to vector<128x4xf32>
    %11 = arith.addf %9, %10 : vector<128x4xf32>
    %cst_14 = arith.constant 0.000000e+00 : f32
    %12 = vector.broadcast %cst_14 : f32 to vector<128x4xf32>
    %13 = arith.maximumf %11, %12 : vector<128x4xf32>
    %14 = vector.shape_cast %13 : vector<128x4xf32> to vector<8x16x4xf32>
    %15 = arith.truncf %14 : vector<8x16x4xf32> to vector<8x16x4xbf16>
    %c2 = arith.constant 2 : index
    %c8 = arith.constant 8 : index
    %c0_15 = arith.constant 0 : index
    %16 = vector.load %arg12[%c2, %c8, %c0_15] : memref<12x26x4xbf16, #tpu.memory_space<vmem>>, vector<8x16x4xbf16>
    tpu.vector_store %arg12[%c2, %c8, %c0_15], %15 {strides = array<i32>} : memref<12x26x4xbf16, #tpu.memory_space<vmem>>, vector<8x16x4xbf16>,
    %c0_16 = arith.constant 0 : index
    %c0_17 = arith.constant 0 : index
    %c0_18 = arith.constant 0 : index
    %c0_19 = arith.constant 0 : index
    %17 = vector.load %arg2[%c0_16, %c0_17, %c0_18, %c0_19] : memref<1x2x16x16xf32, #tpu.memory_space<vmem>>, vector<1x2x16x16xf32>
    %18 = vector.shape_cast %17 : vector<1x2x16x16xf32> to vector<32x16xf32>
    %19 = arith.truncf %18 : vector<32x16xf32> to vector<32x16xbf16>
    %cst_20 = arith.constant dense<0.000000e+00> : vector<32x4xf32>
    %20 = tpu.matmul %19, %0, %cst_20 {dimension_numbers = #tpu.dot_dimension_numbers<[1], [0], [0], [1], [0, 0, 1, 1], [], []>} : vector<32x16xbf16>, vector<16x4xbf16>, vector<32x4xf32> -> vector<32x4xf32>
    %21 = vector.broadcast %1 : vector<1x4xf32> to vector<32x4xf32>
    %22 = arith.addf %20, %21 : vector<32x4xf32>
    %cst_21 = arith.constant 0.000000e+00 : f32
    %23 = vector.broadcast %cst_21 : f32 to vector<32x4xf32>
    %24 = arith.maximumf %22, %23 : vector<32x4xf32>
    %25 = vector.shape_cast %24 : vector<32x4xf32> to vector<2x16x4xf32>
    %26 = arith.truncf %25 : vector<2x16x4xf32> to vector<2x16x4xbf16>
    %c0_22 = arith.constant 0 : index
    %c8_23 = arith.constant 8 : index
    %c0_24 = arith.constant 0 : index
    %27 = vector.load %arg12[%c0_22, %c8_23, %c0_24] : memref<12x26x4xbf16, #tpu.memory_space<vmem>>, vector<2x16x4xbf16>
    tpu.vector_store %arg12[%c0_22, %c8_23, %c0_24], %26 {strides = array<i32>} : memref<12x26x4xbf16, #tpu.memory_space<vmem>>, vector<2x16x4xbf16>,
    %c0_25 = arith.constant 0 : index
    %c0_26 = arith.constant 0 : index
    %c0_27 = arith.constant 0 : index
    %c0_28 = arith.constant 0 : index
    %28 = vector.load %arg4[%c0_25, %c0_26, %c0_27, %c0_28] : memref<1x2x16x16xf32, #tpu.memory_space<vmem>>, vector<1x2x16x16xf32>
    %29 = vector.shape_cast %28 : vector<1x2x16x16xf32> to vector<32x16xf32>
    %30 = arith.truncf %29 : vector<32x16xf32> to vector<32x16xbf16>
    %cst_29 = arith.constant dense<0.000000e+00> : vector<32x4xf32>
    %31 = tpu.matmul %30, %0, %cst_29 {dimension_numbers = #tpu.dot_dimension_numbers<[1], [0], [0], [1], [0, 0, 1, 1], [], []>} : vector<32x16xbf16>, vector<16x4xbf16>, vector<32x4xf32> -> vector<32x4xf32>
    %32 = vector.broadcast %1 : vector<1x4xf32> to vector<32x4xf32>
    %33 = arith.addf %31, %32 : vector<32x4xf32>
    %cst_30 = arith.constant 0.000000e+00 : f32
    %34 = vector.broadcast %cst_30 : f32 to vector<32x4xf32>
    %35 = arith.maximumf %33, %34 : vector<32x4xf32>
    %36 = vector.shape_cast %35 : vector<32x4xf32> to vector<2x16x4xf32>
    %37 = arith.truncf %36 : vector<2x16x4xf32> to vector<2x16x4xbf16>
    %c10 = arith.constant 10 : index
    %c8_31 = arith.constant 8 : index
    %c0_32 = arith.constant 0 : index
    %38 = vector.load %arg12[%c10, %c8_31, %c0_32] : memref<12x26x4xbf16, #tpu.memory_space<vmem>>, vector<2x16x4xbf16>
    tpu.vector_store %arg12[%c10, %c8_31, %c0_32], %37 {strides = array<i32>} : memref<12x26x4xbf16, #tpu.memory_space<vmem>>, vector<2x16x4xbf16>,
    %c0_i32 = arith.constant 0 : i32
    %39 = arith.cmpi eq, %arg1, %c0_i32 : i32
    %40 = arith.extui %39 : i1 to i32
    %c0_i32_33 = arith.constant 0 : i32
    %41 = arith.cmpi ne, %40, %c0_i32_33 : i32
    scf.if %41 {
      %cst_94 = arith.constant 0.000000e+00 : bf16
      %94 = vector.broadcast %cst_94 : bf16 to vector<2x16x4xbf16>
      %c0_95 = arith.constant 0 : index
      %c8_96 = arith.constant 8 : index
      %c0_97 = arith.constant 0 : index
      %95 = vector.load %arg12[%c0_95, %c8_96, %c0_97] : memref<12x26x4xbf16, #tpu.memory_space<vmem>>, vector<2x16x4xbf16>
      tpu.vector_store %arg12[%c0_95, %c8_96, %c0_97], %94 {strides = array<i32>} : memref<12x26x4xbf16, #tpu.memory_space<vmem>>, vector<2x16x4xbf16>,
    } else {
    }
    %c1_i32 = arith.constant 1 : i32
    %42 = arith.cmpi eq, %arg1, %c1_i32 : i32
    %43 = arith.extui %42 : i1 to i32
    %c0_i32_34 = arith.constant 0 : i32
    %44 = arith.cmpi ne, %43, %c0_i32_34 : i32
    scf.if %44 {
      %cst_94 = arith.constant 0.000000e+00 : bf16
      %94 = vector.broadcast %cst_94 : bf16 to vector<2x16x4xbf16>
      %c10_95 = arith.constant 10 : index
      %c8_96 = arith.constant 8 : index
      %c0_97 = arith.constant 0 : index
      %95 = vector.load %arg12[%c10_95, %c8_96, %c0_97] : memref<12x26x4xbf16, #tpu.memory_space<vmem>>, vector<2x16x4xbf16>
      tpu.vector_store %arg12[%c10_95, %c8_96, %c0_97], %94 {strides = array<i32>} : memref<12x26x4xbf16, #tpu.memory_space<vmem>>, vector<2x16x4xbf16>,
    } else {
    }
    %c0_35 = arith.constant 0 : index
    %c6 = arith.constant 6 : index
    %c0_36 = arith.constant 0 : index
    %45 = vector.load %arg12[%c0_35, %c6, %c0_36] : memref<12x26x4xbf16, #tpu.memory_space<vmem>>, vector<8x16x4xbf16>
    %46 = vector.shape_cast %45 : vector<8x16x4xbf16> to vector<128x4xbf16>
    %c0_37 = arith.constant 0 : index
    %c0_38 = arith.constant 0 : index
    %47 = vector.load %arg13[%c0_37, %c0_38] : memref<128x36xbf16, #tpu.memory_space<vmem>>, vector<128x4xbf16>
    tpu.vector_store %arg13[%c0_37, %c0_38], %46 {strides = array<i32>} : memref<128x36xbf16, #tpu.memory_space<vmem>>, vector<128x4xbf16>,
    %c0_39 = arith.constant 0 : index
    %c8_40 = arith.constant 8 : index
    %c0_41 = arith.constant 0 : index
    %48 = vector.load %arg12[%c0_39, %c8_40, %c0_41] : memref<12x26x4xbf16, #tpu.memory_space<vmem>>, vector<8x16x4xbf16>
    %49 = vector.shape_cast %48 : vector<8x16x4xbf16> to vector<128x4xbf16>
    %c0_42 = arith.constant 0 : index
    %c4 = arith.constant 4 : index
    %50 = vector.load %arg13[%c0_42, %c4] : memref<128x36xbf16, #tpu.memory_space<vmem>>, vector<128x4xbf16>
    tpu.vector_store %arg13[%c0_42, %c4], %49 {strides = array<i32>} : memref<128x36xbf16, #tpu.memory_space<vmem>>, vector<128x4xbf16>,
    %c0_43 = arith.constant 0 : index
    %c10_44 = arith.constant 10 : index
    %c0_45 = arith.constant 0 : index
    %51 = vector.load %arg12[%c0_43, %c10_44, %c0_45] : memref<12x26x4xbf16, #tpu.memory_space<vmem>>, vector<8x16x4xbf16>
    %52 = vector.shape_cast %51 : vector<8x16x4xbf16> to vector<128x4xbf16>
    %c0_46 = arith.constant 0 : index
    %c8_47 = arith.constant 8 : index
    %53 = vector.load %arg13[%c0_46, %c8_47] : memref<128x36xbf16, #tpu.memory_space<vmem>>, vector<128x4xbf16>
    tpu.vector_store %arg13[%c0_46, %c8_47], %52 {strides = array<i32>} : memref<128x36xbf16, #tpu.memory_space<vmem>>, vector<128x4xbf16>,
    %c2_48 = arith.constant 2 : index
    %c6_49 = arith.constant 6 : index
    %c0_50 = arith.constant 0 : index
    %54 = vector.load %arg12[%c2_48, %c6_49, %c0_50] : memref<12x26x4xbf16, #tpu.memory_space<vmem>>, vector<8x16x4xbf16>
    %55 = vector.shape_cast %54 : vector<8x16x4xbf16> to vector<128x4xbf16>
    %c0_51 = arith.constant 0 : index
    %c12 = arith.constant 12 : index
    %56 = vector.load %arg13[%c0_51, %c12] : memref<128x36xbf16, #tpu.memory_space<vmem>>, vector<128x4xbf16>
    tpu.vector_store %arg13[%c0_51, %c12], %55 {strides = array<i32>} : memref<128x36xbf16, #tpu.memory_space<vmem>>, vector<128x4xbf16>,
    %c2_52 = arith.constant 2 : index
    %c8_53 = arith.constant 8 : index
    %c0_54 = arith.constant 0 : index
    %57 = vector.load %arg12[%c2_52, %c8_53, %c0_54] : memref<12x26x4xbf16, #tpu.memory_space<vmem>>, vector<8x16x4xbf16>
    %58 = vector.shape_cast %57 : vector<8x16x4xbf16> to vector<128x4xbf16>
    %c0_55 = arith.constant 0 : index
    %c16 = arith.constant 16 : index
    %59 = vector.load %arg13[%c0_55, %c16] : memref<128x36xbf16, #tpu.memory_space<vmem>>, vector<128x4xbf16>
    tpu.vector_store %arg13[%c0_55, %c16], %58 {strides = array<i32>} : memref<128x36xbf16, #tpu.memory_space<vmem>>, vector<128x4xbf16>,
    %c2_56 = arith.constant 2 : index
    %c10_57 = arith.constant 10 : index
    %c0_58 = arith.constant 0 : index
    %60 = vector.load %arg12[%c2_56, %c10_57, %c0_58] : memref<12x26x4xbf16, #tpu.memory_space<vmem>>, vector<8x16x4xbf16>
    %61 = vector.shape_cast %60 : vector<8x16x4xbf16> to vector<128x4xbf16>
    %c0_59 = arith.constant 0 : index
    %c20 = arith.constant 20 : index
    %62 = vector.load %arg13[%c0_59, %c20] : memref<128x36xbf16, #tpu.memory_space<vmem>>, vector<128x4xbf16>
    tpu.vector_store %arg13[%c0_59, %c20], %61 {strides = array<i32>} : memref<128x36xbf16, #tpu.memory_space<vmem>>, vector<128x4xbf16>,
    %c4_60 = arith.constant 4 : index
    %c6_61 = arith.constant 6 : index
    %c0_62 = arith.constant 0 : index
    %63 = vector.load %arg12[%c4_60, %c6_61, %c0_62] : memref<12x26x4xbf16, #tpu.memory_space<vmem>>, vector<8x16x4xbf16>
    %64 = vector.shape_cast %63 : vector<8x16x4xbf16> to vector<128x4xbf16>
    %c0_63 = arith.constant 0 : index
    %c24_64 = arith.constant 24 : index
    %65 = vector.load %arg13[%c0_63, %c24_64] : memref<128x36xbf16, #tpu.memory_space<vmem>>, vector<128x4xbf16>
    tpu.vector_store %arg13[%c0_63, %c24_64], %64 {strides = array<i32>} : memref<128x36xbf16, #tpu.memory_space<vmem>>, vector<128x4xbf16>,
    %c4_65 = arith.constant 4 : index
    %c8_66 = arith.constant 8 : index
    %c0_67 = arith.constant 0 : index
    %66 = vector.load %arg12[%c4_65, %c8_66, %c0_67] : memref<12x26x4xbf16, #tpu.memory_space<vmem>>, vector<8x16x4xbf16>
    %67 = vector.shape_cast %66 : vector<8x16x4xbf16> to vector<128x4xbf16>
    %c0_68 = arith.constant 0 : index
    %c28 = arith.constant 28 : index
    %68 = vector.load %arg13[%c0_68, %c28] : memref<128x36xbf16, #tpu.memory_space<vmem>>, vector<128x4xbf16>
    tpu.vector_store %arg13[%c0_68, %c28], %67 {strides = array<i32>} : memref<128x36xbf16, #tpu.memory_space<vmem>>, vector<128x4xbf16>,
    %c4_69 = arith.constant 4 : index
    %c10_70 = arith.constant 10 : index
    %c0_71 = arith.constant 0 : index
    %69 = vector.load %arg12[%c4_69, %c10_70, %c0_71] : memref<12x26x4xbf16, #tpu.memory_space<vmem>>, vector<8x16x4xbf16>
    %70 = vector.shape_cast %69 : vector<8x16x4xbf16> to vector<128x4xbf16>
    %c0_72 = arith.constant 0 : index
    %c32 = arith.constant 32 : index
    %71 = vector.load %arg13[%c0_72, %c32] : memref<128x36xbf16, #tpu.memory_space<vmem>>, vector<128x4xbf16>
    tpu.vector_store %arg13[%c0_72, %c32], %70 {strides = array<i32>} : memref<128x36xbf16, #tpu.memory_space<vmem>>, vector<128x4xbf16>,
    %c0_73 = arith.constant 0 : index
    %c0_74 = arith.constant 0 : index
    %72 = vector.load %arg13[%c0_73, %c0_74] : memref<128x36xbf16, #tpu.memory_space<vmem>>, vector<128x36xbf16>
    %c0_75 = arith.constant 0 : index
    %c0_76 = arith.constant 0 : index
    %73 = vector.load %arg7[%c0_75, %c0_76] : memref<36x4xbf16, #tpu.memory_space<vmem>>, vector<36x4xbf16>
    %cst_77 = arith.constant dense<0.000000e+00> : vector<128x4xf32>
    %74 = tpu.matmul %72, %73, %cst_77 {dimension_numbers = #tpu.dot_dimension_numbers<[1], [0], [0], [1], [0, 0, 1, 1], [], []>} : vector<128x36xbf16>, vector<36x4xbf16>, vector<128x4xf32> -> vector<128x4xf32>
    %c0_78 = arith.constant 0 : index
    %c0_79 = arith.constant 0 : index
    %75 = vector.load %arg8[%c0_78, %c0_79] : memref<1x4xf32, #tpu.memory_space<vmem>>, vector<1x4xf32>
    %76 = vector.broadcast %75 : vector<1x4xf32> to vector<128x4xf32>
    %77 = arith.addf %74, %76 : vector<128x4xf32>
    %cst_80 = arith.constant 0.000000e+00 : f32
    %78 = vector.broadcast %cst_80 : f32 to vector<128x4xf32>
    %79 = arith.maximumf %77, %78 : vector<128x4xf32>
    %80 = arith.truncf %79 : vector<128x4xf32> to vector<128x4xbf16>
    %c0_81 = arith.constant 0 : index
    %c0_82 = arith.constant 0 : index
    %81 = vector.load %arg9[%c0_81, %c0_82] : memref<4x16xbf16, #tpu.memory_space<vmem>>, vector<4x16xbf16>
    %cst_83 = arith.constant dense<0.000000e+00> : vector<128x16xf32>
    %82 = tpu.matmul %80, %81, %cst_83 {dimension_numbers = #tpu.dot_dimension_numbers<[1], [0], [0], [1], [0, 0, 1, 1], [], []>} : vector<128x4xbf16>, vector<4x16xbf16>, vector<128x16xf32> -> vector<128x16xf32>
    %c0_84 = arith.constant 0 : index
    %c0_85 = arith.constant 0 : index
    %83 = vector.load %arg10[%c0_84, %c0_85] : memref<1x16xf32, #tpu.memory_space<vmem>>, vector<1x16xf32>
    %84 = vector.broadcast %83 : vector<1x16xf32> to vector<128x16xf32>
    %85 = arith.addf %82, %84 : vector<128x16xf32>
    %c0_86 = arith.constant 0 : index
    %c0_87 = arith.constant 0 : index
    %c0_88 = arith.constant 0 : index
    %c0_89 = arith.constant 0 : index
    %86 = vector.load %arg3[%c0_86, %c0_87, %c0_88, %c0_89] : memref<1x8x16x16xf32, #tpu.memory_space<vmem>>, vector<1x8x16x16xf32>
    %87 = vector.shape_cast %86 : vector<1x8x16x16xf32> to vector<8x16x16xf32>
    %88 = vector.shape_cast %87 : vector<8x16x16xf32> to vector<128x16xf32>
    %89 = arith.addf %85, %88 : vector<128x16xf32>
    %90 = vector.shape_cast %89 : vector<128x16xf32> to vector<8x16x16xf32>
    %c0_90 = arith.constant 0 : index
    %c0_91 = arith.constant 0 : index
    %c0_92 = arith.constant 0 : index
    %c0_93 = arith.constant 0 : index
    %91 = vector.load %arg11[%c0_90, %c0_91, %c0_92, %c0_93] : memref<1x8x16x16xf32, #tpu.memory_space<vmem>>, vector<1x8x16x16xf32>
    %92 = vector.shape_cast %91 : vector<1x8x16x16xf32> to vector<8x16x16xf32>
    %93 = vector.shape_cast %90 : vector<8x16x16xf32> to vector<1x8x16x16xf32>
    tpu.vector_store %arg11[%c0_90, %c0_91, %c0_92, %c0_93], %93 {strides = array<i32>} : memref<1x8x16x16xf32, #tpu.memory_space<vmem>>, vector<1x8x16x16xf32>,
    return
  }
  func.func @transform_0(%arg0: i32, %arg1: i32) -> (i32, i32, i32, i32) {
    %c4_i32 = arith.constant 4 : i32
    %0 = arith.muli %arg1, %c4_i32 : i32
    %c1_i32 = arith.constant 1 : i32
    %1 = arith.subi %0, %c1_i32 : i32
    %c0_i32 = arith.constant 0 : i32
    %2 = arith.maxsi %1, %c0_i32 : i32
    %c0_i32_0 = arith.constant 0 : i32
    %c0_i32_1 = arith.constant 0 : i32
    %c0_i32_2 = arith.constant 0 : i32
    return %arg0, %2, %c0_i32_0, %c0_i32_1 : i32, i32, i32, i32
  }
  func.func @transform_1(%arg0: i32, %arg1: i32) -> (i32, i32, i32, i32) {
    %c0_i32 = arith.constant 0 : i32
    %c0_i32_0 = arith.constant 0 : i32
    %c0_i32_1 = arith.constant 0 : i32
    return %arg0, %arg1, %c0_i32, %c0_i32_0 : i32, i32, i32, i32
  }
  func.func @transform_2(%arg0: i32, %arg1: i32) -> (i32, i32, i32, i32) {
    %c1_i32 = arith.constant 1 : i32
    %0 = arith.addi %arg1, %c1_i32 : i32
    %c4_i32 = arith.constant 4 : i32
    %1 = arith.muli %0, %c4_i32 : i32
    %c7_i32 = arith.constant 7 : i32
    %2 = arith.minsi %1, %c7_i32 : i32
    %c0_i32 = arith.constant 0 : i32
    %c0_i32_0 = arith.constant 0 : i32
    %c0_i32_1 = arith.constant 0 : i32
    return %arg0, %2, %c0_i32, %c0_i32_0 : i32, i32, i32, i32
  }
  func.func @transform_3(%arg0: i32, %arg1: i32) -> (i32, i32) {
    %c0_i32 = arith.constant 0 : i32
    %c0_i32_0 = arith.constant 0 : i32
    %c0_i32_1 = arith.constant 0 : i32
    return %c0_i32, %c0_i32_0 : i32, i32
  }
  func.func @transform_4(%arg0: i32, %arg1: i32) -> (i32, i32) {
    %c0_i32 = arith.constant 0 : i32
    %c0_i32_0 = arith.constant 0 : i32
    %c0_i32_1 = arith.constant 0 : i32
    return %c0_i32, %c0_i32_0 : i32, i32
  }
  func.func @transform_5(%arg0: i32, %arg1: i32) -> (i32, i32) {
    %c0_i32 = arith.constant 0 : i32
    %c0_i32_0 = arith.constant 0 : i32
    %c0_i32_1 = arith.constant 0 : i32
    return %c0_i32, %c0_i32_0 : i32, i32
  }
  func.func @transform_6(%arg0: i32, %arg1: i32) -> (i32, i32) {
    %c0_i32 = arith.constant 0 : i32
    %c0_i32_0 = arith.constant 0 : i32
    %c0_i32_1 = arith.constant 0 : i32
    return %c0_i32, %c0_i32_0 : i32, i32
  }
  func.func @transform_7(%arg0: i32, %arg1: i32) -> (i32, i32) {
    %c0_i32 = arith.constant 0 : i32
    %c0_i32_0 = arith.constant 0 : i32
    %c0_i32_1 = arith.constant 0 : i32
    return %c0_i32, %c0_i32_0 : i32, i32
  }
  func.func @transform_8(%arg0: i32, %arg1: i32) -> (i32, i32) {
    %c0_i32 = arith.constant 0 : i32
    %c0_i32_0 = arith.constant 0 : i32
    %c0_i32_1 = arith.constant 0 : i32
    return %c0_i32, %c0_i32_0 : i32, i32
  }
  func.func @transform_9(%arg0: i32, %arg1: i32) -> (i32, i32, i32, i32) {
    %c0_i32 = arith.constant 0 : i32
    %c0_i32_0 = arith.constant 0 : i32
    %c0_i32_1 = arith.constant 0 : i32
    return %arg0, %arg1, %c0_i32, %c0_i32_0 : i32, i32, i32, i32
  }
}

</mosaic_0001>

<llo_original>
// kernel: bottleneck_forward.1
$region0: #{bottleneck_forward.1}
  #allocation0 [shape = 'u32[]', space=smem, size = 0x4, offset = 0x4, fixed_abs, tag = 'smem constant byte address 0x4 - core index']
  #allocation1 [shape = 'u32[144,128]{1,0:T(1,128)}', space=vmem, size = 0x12000, scoped, tag = 'internal scratch']
  #allocation2 [shape = 'bf16[12,26,4]{2,1,0:T(8,128)(2,1)}', space=vmem, size = 0x18000, scoped, tag = 'scratch operand']
  #allocation3 [shape = 'bf16[128,36]{1,0:T(16,128)(2,1)}', space=vmem, size = 0x8000, scoped, tag = 'scratch operand']
  %s0 = inlined_call_operand.vmem [shape: f32[2,16,16,16], index: 0, kind: input, shape index: {}, may-alias: {0,1,2}]
  %s1 = inlined_call_operand.vmem [shape: f32[2,16,16,16], index: 1, kind: input, shape index: {}, may-alias: {0,1,2}]
  %s2 = inlined_call_operand.vmem [shape: f32[2,16,16,16], index: 2, kind: input, shape index: {}, may-alias: {0,1,2}]
  %s3 = inlined_call_operand.vmem [shape: bf16[16,4], index: 3, kind: input, shape index: {}]
  %s4 = inlined_call_operand.vmem [shape: f32[1,4], index: 4, kind: input, shape index: {}]
  %s5 = inlined_call_operand.vmem [shape: bf16[36,4], index: 5, kind: input, shape index: {}]
  %s6 = inlined_call_operand.vmem [shape: f32[1,4], index: 6, kind: input, shape index: {}]
  %s7 = inlined_call_operand.vmem [shape: bf16[4,16], index: 7, kind: input, shape index: {}]
  %s8 = inlined_call_operand.vmem [shape: f32[1,16], index: 8, kind: input, shape index: {}]
  %s9 = inlined_call_operand.vmem [shape: f32[2,16,16,16], index: 9, kind: output, shape index: {}]
  %s10 = sld [smem:[#allocation0]]
  $region77: #{bottleneck_forward.1} parent=0
    _
  %s12 = ssub.s32 1, %s10
  %s13 = scalar_select 0, %s12, %s10
  loop: start=0, step=1, limit=6
  $region2: #{bottleneck_forward.1} parent=0 // loop_pre_header
    _
  $region3: #{bottleneck_forward.1} parent=0 // loop_header
    %s15 = sphi 0, %s19
    %p16 = scmp.ge.s32.totalorder %s15, 6
    %s22 = sphi 0, %s34
    %s23 = sphi 0, %s30
    %s24 = sphi 0, %s22
    %s25 = sphi 0, %s23
    %s26 = sphi 0, %s24
    %s27 = sphi 0, %s25
    %s47 = sphi 0, %s49
    %s50 = sphi 0, %s47
    %s51 = sphi 0, %s50
    %s67 = sphi 0, %s51
    %s75 = sphi 0, %s77
    %s78 = sphi 0, %s75
    %s79 = sphi 0, %s78
    %s95 = sphi 0, %s79
    %s111 = sphi 0, %s113
    %s114 = sphi 0, %s111
    %s115 = sphi 0, %s114
    %s131 = sphi 0, %s115
    %s135 = sphi 0, %s135
    %s137 = sphi 0, %s135
    %s138 = sphi 0, %s137
    %s152 = sphi 0, %s138
    %s156 = sphi 0, %s156
    %s158 = sphi 0, %s156
    %s159 = sphi 0, %s158
    %s173 = sphi 0, %s159
    %s177 = sphi 0, %s177
    %s179 = sphi 0, %s177
    %s180 = sphi 0, %s179
    %s194 = sphi 0, %s180
    %s198 = sphi 0, %s198
    %s200 = sphi 0, %s198
    %s201 = sphi 0, %s200
    %s215 = sphi 0, %s201
    %s219 = sphi 0, %s219
    %s221 = sphi 0, %s219
    %s222 = sphi 0, %s221
    %s236 = sphi 0, %s222
    %s240 = sphi 0, %s240
    %s242 = sphi 0, %s240
    %s243 = sphi 0, %s242
    %s257 = sphi 0, %s243
    %s265 = sphi 0, %s267
    %s268 = sphi 0, %s265
    %s269 = sphi 0, %s268
    %s285 = sphi 0, %s269
  $region4: #{bottleneck_forward.1} parent=0 // loop_header_branch
    %18 = sbr.rel (%p16) target = $region8
  $region5: #{bottleneck_forward.1} parent=0 // loop_body
    %s20 = ssub.s32 %s15, 1
    %s21 = ssub.s32 %s15, 2
    %s28 = sadd.s32 1, %s23
    %p29 = scmp.ge.s32.totalorder %s28, 2
    %s30 = scalar_select %p29, 0, %s28
    %s31 = sadd.s32 1, %s22
    %s32 = scalar_select %p29, %s31, %s22
    %p33 = scmp.ge.s32.totalorder %s32, 2
    %s34 = scalar_select %p33, 0, %s32
    %s35 = smul.u32 %s23, 4
    %s36 = ssub.s32 %s35, 1
    %p37 = scmp.gt.s32.totalorder %s36, 0
    %s38 = scalar_select %p37, %s36, 0
    %s39 = smul.u32 %s30, 4
    %s40 = ssub.s32 %s39, 1
    %p41 = scmp.gt.s32.totalorder %s40, 0
    %s42 = scalar_select %p41, %s40, 0
    %s43 = ssub.s32 %s22, %s34
    %s44 = ssub.s32 %s38, %s42
    %s45 = sor.u32 %s43, %s44
    %p46 = scmp.eq.s32.totalorder %s45, 0
    %s48 = sadd.s32 %s47, 1
    %s49 = scalar_select %p46, %s47, %s48
    %p52 = pneg %p46
    %p53 = scmp.eq.s32.totalorder %s15, 3
    %p54 = por %p52, %p53
    %p55 = scmp.ne.s32.totalorder %s47, %s50
    %p56 = scmp.eq.s32.totalorder %s15, 0
    %p57 = por %p55, %p56
    %p58 = scmp.ne.s32.totalorder %s47, %s50
    %p59 = scmp.eq.s32.totalorder %s20, 3
    %p60 = por %p58, %p59
    %p61 = scmp.ne.s32.totalorder %s50, %s51
    %p62 = scmp.eq.s32.totalorder %s20, 0
    %p63 = por %p61, %p62
    %p64 = scmp.ne.s32.totalorder %s50, %s51
    %p65 = scmp.eq.s32.totalorder %s21, 3
    %p66 = por %p64, %p65
    %p68 = scmp.ne.s32.totalorder %s51, %s67
    %p69 = scmp.eq.s32.totalorder %s21, 0
    %p70 = por %p68, %p69
    %s71 = ssub.s32 %s22, %s34
    %s72 = ssub.s32 %s23, %s30
    %s73 = sor.u32 %s71, %s72
    %p74 = scmp.eq.s32.totalorder %s73, 0
    %s76 = sadd.s32 %s75, 1
    %s77 = scalar_select %p74, %s75, %s76
    %p80 = pneg %p74
    %p81 = scmp.eq.s32.totalorder %s15, 3
    %p82 = por %p80, %p81
    %p83 = scmp.ne.s32.totalorder %s75, %s78
    %p84 = scmp.eq.s32.totalorder %s15, 0
    %p85 = por %p83, %p84
    %p86 = scmp.ne.s32.totalorder %s75, %s78
    %p87 = scmp.eq.s32.totalorder %s20, 3
    %p88 = por %p86, %p87
    %p89 = scmp.ne.s32.totalorder %s78, %s79
    %p90 = scmp.eq.s32.totalorder %s20, 0
    %p91 = por %p89, %p90
    %p92 = scmp.ne.s32.totalorder %s78, %s79
    %p93 = scmp.eq.s32.totalorder %s21, 3
    %p94 = por %p92, %p93
    %p96 = scmp.ne.s32.totalorder %s79, %s95
    %p97 = scmp.eq.s32.totalorder %s21, 0
    %p98 = por %p96, %p97
    %s99 = sadd.s32 %s23, 1
    %s100 = smul.u32 %s99, 4
    %p101 = scmp.lt.s32.totalorder %s100, 7
    %s102 = scalar_select %p101, %s100, 7
    %s103 = sadd.s32 %s30, 1
    %s104 = smul.u32 %s103, 4
    %p105 = scmp.lt.s32.totalorder %s104, 7
    %s106 = scalar_select %p105, %s104, 7
    %s107 = ssub.s32 %s22, %s34
    %s108 = ssub.s32 %s102, %s106
    %s109 = sor.u32 %s107, %s108
    %p110 = scmp.eq.s32.totalorder %s109, 0
    %s112 = sadd.s32 %s111, 1
    %s113 = scalar_select %p110, %s111, %s112
    %p116 = pneg %p110
    %p117 = scmp.eq.s32.totalorder %s15, 3
    %p118 = por %p116, %p117
    %p119 = scmp.ne.s32.totalorder %s111, %s114
    %p120 = scmp.eq.s32.totalorder %s15, 0
    %p121 = por %p119, %p120
    %p122 = scmp.ne.s32.totalorder %s111, %s114
    %p123 = scmp.eq.s32.totalorder %s20, 3
    %p124 = por %p122, %p123
    %p125 = scmp.ne.s32.totalorder %s114, %s115
    %p126 = scmp.eq.s32.totalorder %s20, 0
    %p127 = por %p125, %p126
    %p128 = scmp.ne.s32.totalorder %s114, %s115
    %p129 = scmp.eq.s32.totalorder %s21, 3
    %p130 = por %p128, %p129
    %p132 = scmp.ne.s32.totalorder %s115, %s131
    %p133 = scmp.eq.s32.totalorder %s21, 0
    %p134 = por %p132, %p133
    %s136 = sadd.s32 %s135, 1
    %p139 = scmp.eq.s32.totalorder %s15, 3
    %p140 = scmp.ne.s32.totalorder %s135, %s137
    %p141 = scmp.eq.s32.totalorder %s15, 0
    %p142 = por %p140, %p141
    %p143 = scmp.ne.s32.totalorder %s135, %s137
    %p144 = scmp.eq.s32.totalorder %s20, 3
    %p145 = por %p143, %p144
    %p146 = scmp.ne.s32.totalorder %s137, %s138
    %p147 = scmp.eq.s32.totalorder %s20, 0
    %p148 = por %p146, %p147
    %p149 = scmp.ne.s32.totalorder %s137, %s138
    %p150 = scmp.eq.s32.totalorder %s21, 3
    %p151 = por %p149, %p150
    %p153 = scmp.ne.s32.totalorder %s138, %s152
    %p154 = scmp.eq.s32.totalorder %s21, 0
    %p155 = por %p153, %p154
    %s157 = sadd.s32 %s156, 1
    %p160 = scmp.eq.s32.totalorder %s15, 3
    %p161 = scmp.ne.s32.totalorder %s156, %s158
    %p162 = scmp.eq.s32.totalorder %s15, 0
    %p163 = por %p161, %p162
    %p164 = scmp.ne.s32.totalorder %s156, %s158
    %p165 = scmp.eq.s32.totalorder %s20, 3
    %p166 = por %p164, %p165
    %p167 = scmp.ne.s32.totalorder %s158, %s159
    %p168 = scmp.eq.s32.totalorder %s20, 0
    %p169 = por %p167, %p168
    %p170 = scmp.ne.s32.totalorder %s158, %s159
    %p171 = scmp.eq.s32.totalorder %s21, 3
    %p172 = por %p170, %p171
    %p174 = scmp.ne.s32.totalorder %s159, %s173
    %p175 = scmp.eq.s32.totalorder %s21, 0
    %p176 = por %p174, %p175
    %s178 = sadd.s32 %s177, 1
    %p181 = scmp.eq.s32.totalorder %s15, 3
    %p182 = scmp.ne.s32.totalorder %s177, %s179
    %p183 = scmp.eq.s32.totalorder %s15, 0
    %p184 = por %p182, %p183
    %p185 = scmp.ne.s32.totalorder %s177, %s179
    %p186 = scmp.eq.s32.totalorder %s20, 3
    %p187 = por %p185, %p186
    %p188 = scmp.ne.s32.totalorder %s179, %s180
    %p189 = scmp.eq.s32.totalorder %s20, 0
    %p190 = por %p188, %p189
    %p191 = scmp.ne.s32.totalorder %s179, %s180
    %p192 = scmp.eq.s32.totalorder %s21, 3
    %p193 = por %p191, %p192
    %p195 = scmp.ne.s32.totalorder %s180, %s194
    %p196 = scmp.eq.s32.totalorder %s21, 0
    %p197 = por %p195, %p196
    %s199 = sadd.s32 %s198, 1
    %p202 = scmp.eq.s32.totalorder %s15, 3
    %p203 = scmp.ne.s32.totalorder %s198, %s200
    %p204 = scmp.eq.s32.totalorder %s15, 0
    %p205 = por %p203, %p204
    %p206 = scmp.ne.s32.totalorder %s198, %s200
    %p207 = scmp.eq.s32.totalorder %s20, 3
    %p208 = por %p206, %p207
    %p209 = scmp.ne.s32.totalorder %s200, %s201
    %p210 = scmp.eq.s32.totalorder %s20, 0
    %p211 = por %p209, %p210
    %p212 = scmp.ne.s32.totalorder %s200, %s201
    %p213 = scmp.eq.s32.totalorder %s21, 3
    %p214 = por %p212, %p213
    %p216 = scmp.ne.s32.totalorder %s201, %s215
    %p217 = scmp.eq.s32.totalorder %s21, 0
    %p218 = por %p216, %p217
    %s220 = sadd.s32 %s219, 1
    %p223 = scmp.eq.s32.totalorder %s15, 3
    %p224 = scmp.ne.s32.totalorder %s219, %s221
    %p225 = scmp.eq.s32.totalorder %s15, 0
    %p226 = por %p224, %p225
    %p227 = scmp.ne.s32.totalorder %s219, %s221
    %p228 = scmp.eq.s32.totalorder %s20, 3
    %p229 = por %p227, %p228
    %p230 = scmp.ne.s32.totalorder %s221, %s222
    %p231 = scmp.eq.s32.totalorder %s20, 0
    %p232 = por %p230, %p231
    %p233 = scmp.ne.s32.totalorder %s221, %s222
    %p234 = scmp.eq.s32.totalorder %s21, 3
    %p235 = por %p233, %p234
    %p237 = scmp.ne.s32.totalorder %s222, %s236
    %p238 = scmp.eq.s32.totalorder %s21, 0
    %p239 = por %p237, %p238
    %s241 = sadd.s32 %s240, 1
    %p244 = scmp.eq.s32.totalorder %s15, 3
    %p245 = scmp.ne.s32.totalorder %s240, %s242
    %p246 = scmp.eq.s32.totalorder %s15, 0
    %p247 = por %p245, %p246
    %p248 = scmp.ne.s32.totalorder %s240, %s242
    %p249 = scmp.eq.s32.totalorder %s20, 3
    %p250 = por %p248, %p249
    %p251 = scmp.ne.s32.totalorder %s242, %s243
    %p252 = scmp.eq.s32.totalorder %s20, 0
    %p253 = por %p251, %p252
    %p254 = scmp.ne.s32.totalorder %s242, %s243
    %p255 = scmp.eq.s32.totalorder %s21, 3
    %p256 = por %p254, %p255
    %p258 = scmp.ne.s32.totalorder %s243, %s257
    %p259 = scmp.eq.s32.totalorder %s21, 0
    %p260 = por %p258, %p259
    %s261 = ssub.s32 %s22, %s34
    %s262 = ssub.s32 %s23, %s30
    %s263 = sor.u32 %s261, %s262
    %p264 = scmp.eq.s32.totalorder %s263, 0
    %s266 = sadd.s32 %s265, 1
    %s267 = scalar_select %p264, %s265, %s266
    %p270 = pneg %p264
    %p271 = scmp.eq.s32.totalorder %s15, 3
    %p272 = por %p270, %p271
    %p273 = scmp.ne.s32.totalorder %s265, %s268
    %p274 = scmp.eq.s32.totalorder %s15, 0
    %p275 = por %p273, %p274
    %p276 = scmp.ne.s32.totalorder %s265, %s268
    %p277 = scmp.eq.s32.totalorder %s20, 3
    %p278 = por %p276, %p277
    %p279 = scmp.ne.s32.totalorder %s268, %s269
    %p280 = scmp.eq.s32.totalorder %s20, 0
    %p281 = por %p279, %p280
    %p282 = scmp.ne.s32.totalorder %s268, %s269
    %p283 = scmp.eq.s32.totalorder %s21, 3
    %p284 = por %p282, %p283
    %p286 = scmp.ne.s32.totalorder %s269, %s285
    %p287 = scmp.eq.s32.totalorder %s21, 0
    %p288 = por %p286, %p287
    %p289 = scmp.le.s32.totalorder 1, %s15
    %p290 = scmp.lt.s32.totalorder %s15, 5
    %p291 = pnand %p289, %p290
    %p292 = pneg %p291
    // Predicated region
    $region9: #{bottleneck_forward.1} parent=5 // pred_check
      _
    $region10: #{bottleneck_forward.1} parent=5 // pred_check_branch
      %294 = sbr.rel (%p291) target = $region12
    $region11: #{bottleneck_forward.1} parent=5 // pred_region
      %s295 = ssub.s32 %s15, 1
      // Predicated region
      $region13: #{bottleneck_forward.1} parent=11 // pred_check
        %p296 = pneg %p148
      $region14: #{bottleneck_forward.1} parent=11 // pred_check_branch
        %298 = sbr.rel (%p296) target = $region16
      $region15: #{bottleneck_forward.1} parent=11 // pred_region
        _
      $region16: #{bottleneck_forward.1} parent=11 // pred_fallthru
        _
      // Predicated region
      $region17: #{bottleneck_forward.1} parent=11 // pred_check
        %p299 = pneg %p169
      $region18: #{bottleneck_forward.1} parent=11 // pred_check_branch
        %301 = sbr.rel (%p299) target = $region20
      $region19: #{bottleneck_forward.1} parent=11 // pred_region
        _
      $region20: #{bottleneck_forward.1} parent=11 // pred_fallthru
        _
      // Predicated region
      $region21: #{bottleneck_forward.1} parent=11 // pred_check
        %p302 = pneg %p190
      $region22: #{bottleneck_forward.1} parent=11 // pred_check_branch
        %304 = sbr.rel (%p302) target = $region24
      $region23: #{bottleneck_forward.1} parent=11 // pred_region
        _
      $region24: #{bottleneck_forward.1} parent=11 // pred_fallthru
        _
      // Predicated region
      $region25: #{bottleneck_forward.1} parent=11 // pred_check
        %p305 = pneg %p211
      $region26: #{bottleneck_forward.1} parent=11 // pred_check_branch
        %307 = sbr.rel (%p305) target = $region28
      $region27: #{bottleneck_forward.1} parent=11 // pred_region
        _
      $region28: #{bottleneck_forward.1} parent=11 // pred_fallthru
        _
      // Predicated region
      $region29: #{bottleneck_forward.1} parent=11 // pred_check
        %p308 = pneg %p232
      $region30: #{bottleneck_forward.1} parent=11 // pred_check_branch
        %310 = sbr.rel (%p308) target = $region32
      $region31: #{bottleneck_forward.1} parent=11 // pred_region
        _
      $region32: #{bottleneck_forward.1} parent=11 // pred_fallthru
        _
      // Predicated region
      $region33: #{bottleneck_forward.1} parent=11 // pred_check
        %p311 = pneg %p253
      $region34: #{bottleneck_forward.1} parent=11 // pred_check_branch
        %313 = sbr.rel (%p311) target = $region36
      $region35: #{bottleneck_forward.1} parent=11 // pred_region
        _
      $region36: #{bottleneck_forward.1} parent=11 // pred_fallthru
        _
    $region12: #{bottleneck_forward.1} parent=5 // pred_fallthru
      _
    %p314 = scmp.lt.s32.totalorder %s15, 4
    // Predicated region
    $region37: #{bottleneck_forward.1} parent=5 // pred_check
      %p315 = pneg %p314
    $region38: #{bottleneck_forward.1} parent=5 // pred_check_branch
      %317 = sbr.rel (%p315) target = $region40
    $region39: #{bottleneck_forward.1} parent=5 // pred_region
      // Predicated region
      $region41: #{bottleneck_forward.1} parent=39 // pred_check
        %p318 = pneg %p57
      $region42: #{bottleneck_forward.1} parent=39 // pred_check_branch
        %320 = sbr.rel (%p318) target = $region44
      $region43: #{bottleneck_forward.1} parent=39 // pred_region
        %s321 = smul.u32 %s23, 4
        %s322 = ssub.s32 %s321, 1
        %p323 = scmp.gt.s32.totalorder %s322, 0
        %s324 = scalar_select %p323, %s322, 0
        %s325 = smul.u32 2, %s324
        %p326 = scmp.lt.s32.totalorder %s22, 1
        %s327 = scalar_select %p326, %s22, 1
        %p328 = scmp.lt.s32.totalorder %s325, 15
        %s329 = scalar_select %p328, %s325, 15
        %s330 = smul.addr %s329, 2
        %s331 = smul.addr %s327, 32
        %s332 = sadd.s32 %s330, %s331
        %s333 = smul.addr %s332, 8
        %s334 = scalar_lea.vmem %s0, %s333
        %s335 = smul.u32 %s23, 4
        %s336 = ssub.s32 %s335, 1
        %p337 = scmp.gt.s32.totalorder %s336, 0
        %s338 = scalar_select %p337, %s336, 0
        %s339 = smul.u32 2, %s338
      $region44: #{bottleneck_forward.1} parent=39 // pred_fallthru
        _
      // Predicated region
      $region45: #{bottleneck_forward.1} parent=39 // pred_check
        %p340 = pneg %p85
      $region46: #{bottleneck_forward.1} parent=39 // pred_check_branch
        %342 = sbr.rel (%p340) target = $region48
      $region47: #{bottleneck_forward.1} parent=39 // pred_region
        %s343 = smul.u32 8, %s23
        %p344 = scmp.lt.s32.totalorder %s22, 1
        %s345 = scalar_select %p344, %s22, 1
        %p346 = scmp.lt.s32.totalorder %s343, 15
        %s347 = scalar_select %p346, %s343, 15
        %s348 = smul.addr %s347, 2
        %s349 = smul.addr %s345, 32
        %s350 = sadd.s32 %s348, %s349
        %s351 = smul.addr %s350, 8
        %s352 = scalar_lea.vmem %s1, %s351
        %s353 = smul.u32 8, %s23
      $region48: #{bottleneck_forward.1} parent=39 // pred_fallthru
        _
      // Predicated region
      $region49: #{bottleneck_forward.1} parent=39 // pred_check
        %p354 = pneg %p121
      $region50: #{bottleneck_forward.1} parent=39 // pred_check_branch
        %356 = sbr.rel (%p354) target = $region52
      $region51: #{bottleneck_forward.1} parent=39 // pred_region
        %s357 = sadd.s32 %s23, 1
        %s358 = smul.u32 %s357, 4
        %p359 = scmp.lt.s32.totalorder %s358, 7
        %s360 = scalar_select %p359, %s358, 7
        %s361 = smul.u32 2, %s360
        %p362 = scmp.lt.s32.totalorder %s22, 1
        %s363 = scalar_select %p362, %s22, 1
        %p364 = scmp.lt.s32.totalorder %s361, 15
        %s365 = scalar_select %p364, %s361, 15
        %s366 = smul.addr %s365, 2
        %s367 = smul.addr %s363, 32
        %s368 = sadd.s32 %s366, %s367
        %s369 = smul.addr %s368, 8
        %s370 = scalar_lea.vmem %s2, %s369
        %s371 = sadd.s32 %s23, 1
        %s372 = smul.u32 %s371, 4
        %p373 = scmp.lt.s32.totalorder %s372, 7
        %s374 = scalar_select %p373, %s372, 7
        %s375 = smul.u32 2, %s374
      $region52: #{bottleneck_forward.1} parent=39 // pred_fallthru
        _
    $region40: #{bottleneck_forward.1} parent=5 // pred_fallthru
      _
    %p376 = scmp.le.s32.totalorder 1, %s15
    %p377 = scmp.lt.s32.totalorder %s15, 5
    %p378 = pnand %p376, %p377
    %p379 = pneg %p378
    // Predicated region
    $region53: #{bottleneck_forward.1} parent=5 // pred_check
      _
    $region54: #{bottleneck_forward.1} parent=5 // pred_check_branch
      %381 = sbr.rel (%p378) target = $region56
    $region55: #{bottleneck_forward.1} parent=5 // pred_region
      %s382 = ssub.s32 %s15, 1
      %s383 = smul.u32 %s25, 4
      %s384 = ssub.s32 %s383, 1
      %p385 = scmp.gt.s32.totalorder %s384, 0
      %s386 = scalar_select %p385, %s384, 0
      %s387 = smul.u32 2, %s386
      %p388 = scmp.lt.s32.totalorder %s24, 1
      %s389 = scalar_select %p388, %s24, 1
      %p390 = scmp.lt.s32.totalorder %s387, 15
      %s391 = scalar_select %p390, %s387, 15
      %s392 = smul.addr %s391, 2
      %s393 = smul.addr %s389, 32
      %s394 = sadd.s32 %s392, %s393
      %s395 = smul.addr %s394, 8
      %s396 = scalar_lea.vmem %s0, %s395
      %p397 = pneg %p63
      %p398 = pneg %p60
      %s399 = smul.u32 8, %s25
      %p400 = scmp.lt.s32.totalorder %s24, 1
      %s401 = scalar_select %p400, %s24, 1
      %p402 = scmp.lt.s32.totalorder %s399, 15
      %s403 = scalar_select %p402, %s399, 15
      %s404 = smul.addr %s403, 2
      %s405 = smul.addr %s401, 32
      %s406 = sadd.s32 %s404, %s405
      %s407 = smul.addr %s406, 8
      %s408 = scalar_lea.vmem %s1, %s407
      %p409 = pneg %p91
      %p410 = pneg %p88
      %s411 = sadd.s32 %s25, 1
      %s412 = smul.u32 %s411, 4
      %p413 = scmp.lt.s32.totalorder %s412, 7
      %s414 = scalar_select %p413, %s412, 7
      %s415 = smul.u32 2, %s414
      %p416 = scmp.lt.s32.totalorder %s24, 1
      %s417 = scalar_select %p416, %s24, 1
      %p418 = scmp.lt.s32.totalorder %s415, 15
      %s419 = scalar_select %p418, %s415, 15
      %s420 = smul.addr %s419, 2
      %s421 = smul.addr %s417, 32
      %s422 = sadd.s32 %s420, %s421
      %s423 = smul.addr %s422, 8
      %s424 = scalar_lea.vmem %s2, %s423
      %p425 = pneg %p127
      %p426 = pneg %p124
      %p427 = pneg %p148
      %p428 = pneg %p145
      %p429 = pneg %p169
      %p430 = pneg %p166
      %p431 = pneg %p190
      %p432 = pneg %p187
      %p433 = pneg %p211
      %p434 = pneg %p208
      %p435 = pneg %p232
      %p436 = pneg %p229
      %p437 = pneg %p253
      %p438 = pneg %p250
      %p439 = pneg %p281
      %p440 = pneg %p278
      %s441 = smul.u32 8, %s25
      %p442 = scmp.lt.s32.totalorder %s24, 1
      %s443 = scalar_select %p442, %s24, 1
      %p444 = scmp.lt.s32.totalorder %s441, 15
      %s445 = scalar_select %p444, %s441, 15
      %s446 = smul.addr %s445, 2
      %s447 = smul.addr %s443, 32
      %s448 = sadd.s32 %s446, %s447
      %s449 = smul.addr %s448, 8
      %s450 = scalar_lea.vmem %s9, %s449
      %s451 = smul.u32 %s25, 4
      %s452 = ssub.s32 %s451, 1
      %p453 = scmp.gt.s32.totalorder %s452, 0
      %s454 = scalar_select %p453, %s452, 0
      %s455 = smul.u32 2, %s454
      %p456 = scmp.lt.s32.totalorder %s24, 1
      %s457 = scalar_select %p456, %s24, 1
      %p458 = scmp.lt.s32.totalorder %s455, 15
      %s459 = scalar_select %p458, %s455, 15
      %s460 = smul.addr %s459, 2
      %s461 = smul.addr %s457, 32
      %s462 = sadd.s32 %s460, %s461
      %s463 = smul.addr %s462, 8
      %s464 = scalar_lea.vmem %s0, %s463
      %s465 = smul.u32 %s25, 4
      %s466 = ssub.s32 %s465, 1
      %p467 = scmp.gt.s32.totalorder %s466, 0
      %s468 = scalar_select %p467, %s466, 0
      %s469 = smul.u32 2, %s468
      %s470 = smul.u32 8, %s25
      %p471 = scmp.lt.s32.totalorder %s24, 1
      %s472 = scalar_select %p471, %s24, 1
      %p473 = scmp.lt.s32.totalorder %s470, 15
      %s474 = scalar_select %p473, %s470, 15
      %s475 = smul.addr %s474, 2
      %s476 = smul.addr %s472, 32
      %s477 = sadd.s32 %s475, %s476
      %s478 = smul.addr %s477, 8
      %s479 = scalar_lea.vmem %s1, %s478
      %s480 = smul.u32 8, %s25
      %s481 = sadd.s32 %s25, 1
      %s482 = smul.u32 %s481, 4
      %p483 = scmp.lt.s32.totalorder %s482, 7
      %s484 = scalar_select %p483, %s482, 7
      %s485 = smul.u32 2, %s484
      %p486 = scmp.lt.s32.totalorder %s24, 1
      %s487 = scalar_select %p486, %s24, 1
      %p488 = scmp.lt.s32.totalorder %s485, 15
      %s489 = scalar_select %p488, %s485, 15
      %s490 = smul.addr %s489, 2
      %s491 = smul.addr %s487, 32
      %s492 = sadd.s32 %s490, %s491
      %s493 = smul.addr %s492, 8
      %s494 = scalar_lea.vmem %s2, %s493
      %s495 = sadd.s32 %s25, 1
      %s496 = smul.u32 %s495, 4
      %p497 = scmp.lt.s32.totalorder %s496, 7
      %s498 = scalar_select %p497, %s496, 7
      %s499 = smul.u32 2, %s498
      %s500 = smul.u32 8, %s25
      %p501 = scmp.lt.s32.totalorder %s24, 1
      %s502 = scalar_select %p501, %s24, 1
      %p503 = scmp.lt.s32.totalorder %s500, 15
      %s504 = scalar_select %p503, %s500, 15
      %s505 = smul.addr %s504, 2
      %s506 = smul.addr %s502, 32
      %s507 = sadd.s32 %s505, %s506
      %s508 = smul.addr %s507, 8
      %s509 = scalar_lea.vmem %s9, %s508
      %s510 = smul.u32 8, %s25
      %v512 = vld [vmem:[%s3] sm:$0xf]
      %v513 = vld [vmem:[%s3 + $0x4] sm:$0xf]
      %v514 = vld [vmem:[%s4] sm:$0x1]
      %vm515 = vcmask 27648
      %516 = vst.msk [vmem:[#allocation2] sm:$0xf] %vm515, 0
      %517 = vst.msk [vmem:[#allocation2 + $0x10] sm:$0xf] %vm515, 0
      %518 = vst.msk [vmem:[#allocation2 + $0x20] sm:$0xf] %vm515, 0
      %519 = vst.msk [vmem:[#allocation2 + $0x30] sm:$0xf] %vm515, 0
      %520 = vst.msk [vmem:[#allocation2 + $0x40] sm:$0xf] %vm515, 0
      %521 = vst.msk [vmem:[#allocation2 + $0x50] sm:$0xf] %vm515, 0
      %522 = vst.msk [vmem:[#allocation2 + $0x60] sm:$0xf] %vm515, 0
      %523 = vst.msk [vmem:[#allocation2 + $0x70] sm:$0xf] %vm515, 0
      %524 = vst.msk [vmem:[#allocation2 + $0x80] sm:$0xf] %vm515, 0
      %525 = vst.msk [vmem:[#allocation2 + $0x90] sm:$0xf] %vm515, 0
      %526 = vst.msk [vmem:[#allocation2 + $0xa0] sm:$0xf] %vm515, 0
      %527 = vst.msk [vmem:[#allocation2 + $0xb0] sm:$0xf] %vm515, 0
      %vm528 = vcmask 24576
      %529 = vst.msk [vmem:[#allocation2 + $0xc] sm:$0x1] %vm528, 0
      %530 = vst.msk [vmem:[#allocation2 + $0x1c] sm:$0x1] %vm528, 0
      %531 = vst.msk [vmem:[#allocation2 + $0x2c] sm:$0x1] %vm528, 0
      %532 = vst.msk [vmem:[#allocation2 + $0x3c] sm:$0x1] %vm528, 0
      %533 = vst.msk [vmem:[#allocation2 + $0x4c] sm:$0x1] %vm528, 0
      %534 = vst.msk [vmem:[#allocation2 + $0x5c] sm:$0x1] %vm528, 0
      %535 = vst.msk [vmem:[#allocation2 + $0x6c] sm:$0x1] %vm528, 0
      %536 = vst.msk [vmem:[#allocation2 + $0x7c] sm:$0x1] %vm528, 0
      %537 = vst.msk [vmem:[#allocation2 + $0x8c] sm:$0x1] %vm528, 0
      %538 = vst.msk [vmem:[#allocation2 + $0x9c] sm:$0x1] %vm528, 0
      %539 = vst.msk [vmem:[#allocation2 + $0xac] sm:$0x1] %vm528, 0
      %540 = vst.msk [vmem:[#allocation2 + $0xbc] sm:$0x1] %vm528, 0
      %v541 = vld [vmem:[%s479] sm:$0xff]
      %v542 = vld [vmem:[%s479 + $0x8] sm:$0xff]
      %v543 = vld [vmem:[%s479 + $0x10] sm:$0xff]
      %v544 = vld [vmem:[%s479 + $0x18] sm:$0xff]
      %v545 = vld [vmem:[%s479 + $0x20] sm:$0xff]
      %v546 = vld [vmem:[%s479 + $0x28] sm:$0xff]
      %v547 = vld [vmem:[%s479 + $0x30] sm:$0xff]
      %v548 = vld [vmem:[%s479 + $0x38] sm:$0xff]
      %v549 = vld [vmem:[%s479 + $0x40] sm:$0xff]
      %v550 = vld [vmem:[%s479 + $0x48] sm:$0xff]
      %v551 = vld [vmem:[%s479 + $0x50] sm:$0xff]
      %v552 = vld [vmem:[%s479 + $0x58] sm:$0xff]
      %v553 = vld [vmem:[%s479 + $0x60] sm:$0xff]
      %v554 = vld [vmem:[%s479 + $0x68] sm:$0xff]
      %v555 = vld [vmem:[%s479 + $0x70] sm:$0xff]
      %v556 = vld [vmem:[%s479 + $0x78] sm:$0xff]
      %v557 = vpack.c.bf16 %v542, %v541
      %v558 = vpack.c.bf16 %v544, %v543
      %v559 = vpack.c.bf16 %v546, %v545
      %v560 = vpack.c.bf16 %v548, %v547
      %v561 = vpack.c.bf16 %v550, %v549
      %v562 = vpack.c.bf16 %v552, %v551
      %v563 = vpack.c.bf16 %v554, %v553
      %v564 = vpack.c.bf16 %v556, %v555
      %v566 = vlaneseq
      %v567 = vshrl.u32 %v566, 7
      %v568 = vsub.s32 0, %v567
      %v569 = vrot.slane %v514, %v568
      %v573 = vunpack.c.l.b16 %v512
      %v574 = vunpack.c.l.b16 %v513
      %v575 = vpack.c.b16 %v574, %v573
      %vm577 = vcmask 130048
      %v579 = vsel %vm577, %v557, 0
      %v582 = vsel %vm577, %v558, 0
      %v585 = vsel %vm577, %v559, 0
      %v588 = vsel %vm577, %v560, 0
      %v591 = vsel %vm577, %v561, 0
      %v594 = vsel %vm577, %v562, 0
      %v597 = vsel %vm577, %v563, 0
      %v600 = vsel %vm577, %v564, 0
      %602 = vmatprep.subr.bf16.mxu0 0
      %603 = vmatpush1.bf16.msra.mxu0 %v575
      %604 = vmatprep.subr.bf16.mxu0 0
      %605 = vmatpush1.bf16.msra.mxu0 0
      %606 = vmatprep.subr.bf16.mxu0 0
      %607 = vmatpush1.bf16.msra.mxu0 0
      %608 = vmatprep.subr.bf16.mxu0 0
      %609 = vmatpush1.bf16.msra.mxu0 0
      %610 = vmatprep.subr.bf16.mxu0 0
      %611 = vmatpush1.bf16.msra.mxu0 0
      %612 = vmatprep.subr.bf16.mxu0 0
      %613 = vmatpush1.bf16.msra.mxu0 0
      %614 = vmatprep.subr.bf16.mxu0 0
      %615 = vmatpush1.bf16.msra.mxu0 0
      %616 = vmatprep.subr.bf16.mxu0 0
      %617 = vmatpush1.bf16.msra.mxu0 0
      %618 = vmatprep.subr.bf16.mxu0 0
      %619 = vmatpush1.bf16.msra.mxu0 0
      %620 = vmatprep.subr.bf16.mxu0 0
      %621 = vmatpush1.bf16.msra.mxu0 0
      %622 = vmatprep.subr.bf16.mxu0 0
      %623 = vmatpush1.bf16.msra.mxu0 0
      %624 = vmatprep.subr.bf16.mxu0 0
      %625 = vmatpush1.bf16.msra.mxu0 0
      %626 = vmatprep.subr.bf16.mxu0 0
      %627 = vmatpush1.bf16.msra.mxu0 0
      %628 = vmatprep.subr.bf16.mxu0 0
      %629 = vmatpush1.bf16.msra.mxu0 0
      %630 = vmatprep.subr.bf16.mxu0 0
      %631 = vmatpush1.bf16.msra.mxu0 0
      %632 = vmatprep.subr.bf16.mxu0 0
      %633 = vmatpush1.bf16.msra.mxu0 0
      %634 = vmatprep.mubr.bf16.mxu0 0
      %635 = vmatmul.mubr.bf16.gmra.mrb[0].mxu0 %v579
      %v636 = vpop.f32.mrb[0].mxu0
      %v637 = vadd.f32 %v569, %v636
      %v638 = vpop.f32.mrb[0].mxu0
      %v639 = vpop.f32.mrb[0].mxu0
      %v640 = vadd.f32 %v569, %v639
      %v641 = vpop.f32.mrb[0].mxu0
      %642 = vmatprep.mubr.bf16.mxu0 0
      %643 = vmatmul.mubr.bf16.gmra.mrb[0].mxu0 %v582
      %v644 = vpop.f32.mrb[0].mxu0
      %v645 = vadd.f32 %v569, %v644
      %v646 = vpop.f32.mrb[0].mxu0
      %v647 = vpop.f32.mrb[0].mxu0
      %v648 = vadd.f32 %v569, %v647
      %v649 = vpop.f32.mrb[0].mxu0
      %650 = vmatprep.mubr.bf16.mxu0 0
      %651 = vmatmul.mubr.bf16.gmra.mrb[0].mxu0 %v585
      %v652 = vpop.f32.mrb[0].mxu0
      %v653 = vadd.f32 %v569, %v652
      %v654 = vpop.f32.mrb[0].mxu0
      %v655 = vpop.f32.mrb[0].mxu0
      %v656 = vadd.f32 %v569, %v655
      %v657 = vpop.f32.mrb[0].mxu0
      %658 = vmatprep.mubr.bf16.mxu0 0
      %659 = vmatmul.mubr.bf16.gmra.mrb[0].mxu0 %v588
      %v660 = vpop.f32.mrb[0].mxu0
      %v661 = vadd.f32 %v569, %v660
      %v662 = vpop.f32.mrb[0].mxu0
      %v663 = vpop.f32.mrb[0].mxu0
      %v664 = vadd.f32 %v569, %v663
      %v665 = vpop.f32.mrb[0].mxu0
      %666 = vmatprep.mubr.bf16.mxu0 0
      %667 = vmatmul.mubr.bf16.gmra.mrb[0].mxu0 %v591
      %v668 = vpop.f32.mrb[0].mxu0
      %v669 = vadd.f32 %v569, %v668
      %v670 = vpop.f32.mrb[0].mxu0
      %v671 = vpop.f32.mrb[0].mxu0
      %v672 = vadd.f32 %v569, %v671
      %v673 = vpop.f32.mrb[0].mxu0
      %674 = vmatprep.mubr.bf16.mxu0 0
      %675 = vmatmul.mubr.bf16.gmra.mrb[0].mxu0 %v594
      %v676 = vpop.f32.mrb[0].mxu0
      %v677 = vadd.f32 %v569, %v676
      %v678 = vpop.f32.mrb[0].mxu0
      %v679 = vpop.f32.mrb[0].mxu0
      %v680 = vadd.f32 %v569, %v679
      %v681 = vpop.f32.mrb[0].mxu0
      %682 = vmatprep.mubr.bf16.mxu0 0
      %683 = vmatmul.mubr.bf16.gmra.mrb[0].mxu0 %v597
      %v684 = vpop.f32.mrb[0].mxu0
      %v685 = vadd.f32 %v569, %v684
      %v686 = vpop.f32.mrb[0].mxu0
      %v687 = vpop.f32.mrb[0].mxu0
      %v688 = vadd.f32 %v569, %v687
      %v689 = vpop.f32.mrb[0].mxu0
      %690 = vmatprep.mubr.bf16.mxu0 0
      %691 = vmatmul.mubr.bf16.gmra.mrb[0].mxu0 %v600
      %v692 = vpop.f32.mrb[0].mxu0
      %v693 = vadd.f32 %v569, %v692
      %v694 = vpop.f32.mrb[0].mxu0
      %v695 = vpop.f32.mrb[0].mxu0
      %v696 = vadd.f32 %v569, %v695
      %v697 = vpop.f32.mrb[0].mxu0
      %698 = vdwg.mxu0
      %v699 = vmax.f32 %v637, 0.0
      %v700 = vmax.f32 %v640, 0.0
      %v701 = vmax.f32 %v645, 0.0
      %v702 = vmax.f32 %v648, 0.0
      %v703 = vmax.f32 %v653, 0.0
      %v704 = vmax.f32 %v656, 0.0
      %v705 = vmax.f32 %v661, 0.0
      %v706 = vmax.f32 %v664, 0.0
      %v707 = vmax.f32 %v669, 0.0
      %v708 = vmax.f32 %v672, 0.0
      %v709 = vmax.f32 %v677, 0.0
      %v710 = vmax.f32 %v680, 0.0
      %v711 = vmax.f32 %v685, 0.0
      %v712 = vmax.f32 %v688, 0.0
      %v713 = vmax.f32 %v693, 0.0
      %v714 = vmax.f32 %v696, 0.0
      %v715 = vpack.c.bf16 %v700, %v699
      %v716 = vpack.c.bf16 %v702, %v701
      %v717 = vpack.c.bf16 %v704, %v703
      %v718 = vpack.c.bf16 %v706, %v705
      %v719 = vpack.c.bf16 %v708, %v707
      %v720 = vpack.c.bf16 %v710, %v709
      %v721 = vpack.c.bf16 %v712, %v711
      %v722 = vpack.c.bf16 %v714, %v713
      %v731 = vunpack.c.l.b16 %v715
      %v732 = vunpack.c.h.b16 %v715
      %v733 = vunpack.c.l.b16 %v716
      %v734 = vunpack.c.h.b16 %v716
      %v735 = vunpack.c.l.b16 %v717
      %v736 = vunpack.c.h.b16 %v717
      %v737 = vunpack.c.l.b16 %v718
      %v738 = vunpack.c.h.b16 %v718
      %v739 = vunpack.c.l.b16 %v719
      %v740 = vunpack.c.h.b16 %v719
      %v741 = vunpack.c.l.b16 %v720
      %v742 = vunpack.c.h.b16 %v720
      %v743 = vunpack.c.l.b16 %v721
      %v744 = vunpack.c.h.b16 %v721
      %v745 = vunpack.c.l.b16 %v722
      %v746 = vunpack.c.h.b16 %v722
      %v747 = vpack.c.b16 %v731, %v731
      %v748 = vpack.c.b16 %v732, %v732
      %v749 = vpack.c.b16 %v733, %v733
      %v750 = vpack.c.b16 %v734, %v734
      %v751 = vpack.c.b16 %v735, %v735
      %v752 = vpack.c.b16 %v736, %v736
      %v753 = vpack.c.b16 %v737, %v737
      %v754 = vpack.c.b16 %v738, %v738
      %v755 = vpack.c.b16 %v739, %v739
      %v756 = vpack.c.b16 %v740, %v740
      %v757 = vpack.c.b16 %v741, %v741
      %v758 = vpack.c.b16 %v742, %v742
      %v759 = vpack.c.b16 %v743, %v743
      %v760 = vpack.c.b16 %v744, %v744
      %v761 = vpack.c.b16 %v745, %v745
      %v762 = vpack.c.b16 %v746, %v746
      %s779 = scalar_lea.vmem [#allocation2], 32
      %780 = vst.msk [vmem:[%s779 + $0x4] sm:$0xf] %vm515, %v747
      %781 = vst.msk [vmem:[%s779 + $0x8] sm:$0xf] %vm515, %v748
      %782 = vst.msk [vmem:[%s779 + $0x14] sm:$0xf] %vm515, %v749
      %783 = vst.msk [vmem:[%s779 + $0x18] sm:$0xf] %vm515, %v750
      %784 = vst.msk [vmem:[%s779 + $0x24] sm:$0xf] %vm515, %v751
      %785 = vst.msk [vmem:[%s779 + $0x28] sm:$0xf] %vm515, %v752
      %786 = vst.msk [vmem:[%s779 + $0x34] sm:$0xf] %vm515, %v753
      %787 = vst.msk [vmem:[%s779 + $0x38] sm:$0xf] %vm515, %v754
      %788 = vst.msk [vmem:[%s779 + $0x44] sm:$0xf] %vm515, %v755
      %789 = vst.msk [vmem:[%s779 + $0x48] sm:$0xf] %vm515, %v756
      %790 = vst.msk [vmem:[%s779 + $0x54] sm:$0xf] %vm515, %v757
      %791 = vst.msk [vmem:[%s779 + $0x58] sm:$0xf] %vm515, %v758
      %792 = vst.msk [vmem:[%s779 + $0x64] sm:$0xf] %vm515, %v759
      %793 = vst.msk [vmem:[%s779 + $0x68] sm:$0xf] %vm515, %v760
      %794 = vst.msk [vmem:[%s779 + $0x74] sm:$0xf] %vm515, %v761
      %795 = vst.msk [vmem:[%s779 + $0x78] sm:$0xf] %vm515, %v762
      %v796 = vld [vmem:[%s464] sm:$0xff]
      %v797 = vld [vmem:[%s464 + $0x8] sm:$0xff]
      %v798 = vld [vmem:[%s464 + $0x10] sm:$0xff]
      %v799 = vld [vmem:[%s464 + $0x18] sm:$0xff]
      %v800 = vpack.c.bf16 %v797, %v796
      %v801 = vpack.c.bf16 %v799, %v798
      %v803 = vsel %vm577, %v800, 0
      %v806 = vsel %vm577, %v801, 0
      %808 = vmatprep.subr.bf16.mxu0 0
      %809 = vmatpush1.bf16.msra.mxu0 %v575
      %810 = vmatprep.subr.bf16.mxu0 0
      %811 = vmatpush1.bf16.msra.mxu0 0
      %812 = vmatprep.subr.bf16.mxu0 0
      %813 = vmatpush1.bf16.msra.mxu0 0
      %814 = vmatprep.subr.bf16.mxu0 0
      %815 = vmatpush1.bf16.msra.mxu0 0
      %816 = vmatprep.subr.bf16.mxu0 0
      %817 = vmatpush1.bf16.msra.mxu0 0
      %818 = vmatprep.subr.bf16.mxu0 0
      %819 = vmatpush1.bf16.msra.mxu0 0
      %820 = vmatprep.subr.bf16.mxu0 0
      %821 = vmatpush1.bf16.msra.mxu0 0
      %822 = vmatprep.subr.bf16.mxu0 0
      %823 = vmatpush1.bf16.msra.mxu0 0
      %824 = vmatprep.subr.bf16.mxu0 0
      %825 = vmatpush1.bf16.msra.mxu0 0
      %826 = vmatprep.subr.bf16.mxu0 0
      %827 = vmatpush1.bf16.msra.mxu0 0
      %828 = vmatprep.subr.bf16.mxu0 0
      %829 = vmatpush1.bf16.msra.mxu0 0
      %830 = vmatprep.subr.bf16.mxu0 0
      %831 = vmatpush1.bf16.msra.mxu0 0
      %832 = vmatprep.subr.bf16.mxu0 0
      %833 = vmatpush1.bf16.msra.mxu0 0
      %834 = vmatprep.subr.bf16.mxu0 0
      %835 = vmatpush1.bf16.msra.mxu0 0
      %836 = vmatprep.subr.bf16.mxu0 0
      %837 = vmatpush1.bf16.msra.mxu0 0
      %838 = vmatprep.subr.bf16.mxu0 0
      %839 = vmatpush1.bf16.msra.mxu0 0
      %840 = vmatprep.mubr.bf16.mxu0 0
      %841 = vmatmul.mubr.bf16.gmra.mrb[0].mxu0 %v803
      %v842 = vpop.f32.mrb[0].mxu0
      %v843 = vadd.f32 %v569, %v842
      %v844 = vpop.f32.mrb[0].mxu0
      %v845 = vpop.f32.mrb[0].mxu0
      %v846 = vadd.f32 %v569, %v845
      %v847 = vpop.f32.mrb[0].mxu0
      %848 = vmatprep.mubr.bf16.mxu0 0
      %849 = vmatmul.mubr.bf16.gmra.mrb[0].mxu0 %v806
      %v850 = vpop.f32.mrb[0].mxu0
      %v851 = vadd.f32 %v569, %v850
      %v852 = vpop.f32.mrb[0].mxu0
      %v853 = vpop.f32.mrb[0].mxu0
      %v854 = vadd.f32 %v569, %v853
      %v855 = vpop.f32.mrb[0].mxu0
      %856 = vdwg.mxu0
      %v857 = vmax.f32 %v843, 0.0
      %v858 = vmax.f32 %v846, 0.0
      %v859 = vmax.f32 %v851, 0.0
      %v860 = vmax.f32 %v854, 0.0
      %v861 = vpack.c.bf16 %v858, %v857
      %v862 = vpack.c.bf16 %v860, %v859
      %v865 = vunpack.c.l.b16 %v861
      %v866 = vunpack.c.h.b16 %v861
      %v867 = vunpack.c.l.b16 %v862
      %v868 = vunpack.c.h.b16 %v862
      %v869 = vpack.c.b16 %v865, %v865
      %v870 = vpack.c.b16 %v866, %v866
      %v871 = vpack.c.b16 %v867, %v867
      %v872 = vpack.c.b16 %v868, %v868
      %877 = vst.msk [vmem:[#allocation2 + $0x4] sm:$0xf] %vm515, %v869
      %878 = vst.msk [vmem:[#allocation2 + $0x8] sm:$0xf] %vm515, %v870
      %879 = vst.msk [vmem:[#allocation2 + $0x14] sm:$0xf] %vm515, %v871
      %880 = vst.msk [vmem:[#allocation2 + $0x18] sm:$0xf] %vm515, %v872
      %v881 = vld [vmem:[%s494] sm:$0xff]
      %v882 = vld [vmem:[%s494 + $0x8] sm:$0xff]
      %v883 = vld [vmem:[%s494 + $0x10] sm:$0xff]
      %v884 = vld [vmem:[%s494 + $0x18] sm:$0xff]
      %v885 = vpack.c.bf16 %v882, %v881
      %v886 = vpack.c.bf16 %v884, %v883
      %v888 = vsel %vm577, %v885, 0
      %v891 = vsel %vm577, %v886, 0
      %893 = vmatprep.subr.bf16.mxu0 0
      %894 = vmatpush1.bf16.msra.mxu0 %v575
      %895 = vmatprep.subr.bf16.mxu0 0
      %896 = vmatpush1.bf16.msra.mxu0 0
      %897 = vmatprep.subr.bf16.mxu0 0
      %898 = vmatpush1.bf16.msra.mxu0 0
      %899 = vmatprep.subr.bf16.mxu0 0
      %900 = vmatpush1.bf16.msra.mxu0 0
      %901 = vmatprep.subr.bf16.mxu0 0
      %902 = vmatpush1.bf16.msra.mxu0 0
      %903 = vmatprep.subr.bf16.mxu0 0
      %904 = vmatpush1.bf16.msra.mxu0 0
      %905 = vmatprep.subr.bf16.mxu0 0
      %906 = vmatpush1.bf16.msra.mxu0 0
      %907 = vmatprep.subr.bf16.mxu0 0
      %908 = vmatpush1.bf16.msra.mxu0 0
      %909 = vmatprep.subr.bf16.mxu0 0
      %910 = vmatpush1.bf16.msra.mxu0 0
      %911 = vmatprep.subr.bf16.mxu0 0
      %912 = vmatpush1.bf16.msra.mxu0 0
      %913 = vmatprep.subr.bf16.mxu0 0
      %914 = vmatpush1.bf16.msra.mxu0 0
      %915 = vmatprep.subr.bf16.mxu0 0
      %916 = vmatpush1.bf16.msra.mxu0 0
      %917 = vmatprep.subr.bf16.mxu0 0
      %918 = vmatpush1.bf16.msra.mxu0 0
      %919 = vmatprep.subr.bf16.mxu0 0
      %920 = vmatpush1.bf16.msra.mxu0 0
      %921 = vmatprep.subr.bf16.mxu0 0
      %922 = vmatpush1.bf16.msra.mxu0 0
      %923 = vmatprep.subr.bf16.mxu0 0
      %924 = vmatpush1.bf16.msra.mxu0 0
      %925 = vmatprep.mubr.bf16.mxu0 0
      %926 = vmatmul.mubr.bf16.gmra.mrb[0].mxu0 %v888
      %v927 = vpop.f32.mrb[0].mxu0
      %v928 = vadd.f32 %v569, %v927
      %v929 = vpop.f32.mrb[0].mxu0
      %v930 = vpop.f32.mrb[0].mxu0
      %v931 = vadd.f32 %v569, %v930
      %v932 = vpop.f32.mrb[0].mxu0
      %933 = vmatprep.mubr.bf16.mxu0 0
      %934 = vmatmul.mubr.bf16.gmra.mrb[0].mxu0 %v891
      %v935 = vpop.f32.mrb[0].mxu0
      %v936 = vadd.f32 %v569, %v935
      %v937 = vpop.f32.mrb[0].mxu0
      %v938 = vpop.f32.mrb[0].mxu0
      %v939 = vadd.f32 %v569, %v938
      %v940 = vpop.f32.mrb[0].mxu0
      %941 = vdwg.mxu0
      %v942 = vmax.f32 %v928, 0.0
      %v943 = vmax.f32 %v931, 0.0
      %v944 = vmax.f32 %v936, 0.0
      %v945 = vmax.f32 %v939, 0.0
      %v946 = vpack.c.bf16 %v943, %v942
      %v947 = vpack.c.bf16 %v945, %v944
      %v950 = vunpack.c.l.b16 %v946
      %v951 = vunpack.c.h.b16 %v946
      %v952 = vunpack.c.l.b16 %v947
      %v953 = vunpack.c.h.b16 %v947
      %v954 = vpack.c.b16 %v950, %v950
      %v955 = vpack.c.b16 %v951, %v951
      %v956 = vpack.c.b16 %v952, %v952
      %v957 = vpack.c.b16 %v953, %v953
      %s962 = scalar_lea.vmem [#allocation2], 160
      %963 = vst.msk [vmem:[%s962 + $0x4] sm:$0xf] %vm515, %v954
      %964 = vst.msk [vmem:[%s962 + $0x8] sm:$0xf] %vm515, %v955
      %965 = vst.msk [vmem:[%s962 + $0x14] sm:$0xf] %vm515, %v956
      %966 = vst.msk [vmem:[%s962 + $0x18] sm:$0xf] %vm515, %v957
      %p967 = scmp.eq.s32.totalorder %s25, 0
      // Predicated region
      $region57: #{bottleneck_forward.1} parent=55 // pred_check
        %p968 = pneg %p967
      $region58: #{bottleneck_forward.1} parent=55 // pred_check_branch
        %970 = sbr.rel (%p968) target = $region60
      $region59: #{bottleneck_forward.1} parent=55 // pred_region
        %971 = vst.msk [vmem:[#allocation2 + $0x4] sm:$0xf] %vm515, 0
        %972 = vst.msk [vmem:[#allocation2 + $0x8] sm:$0xf] %vm515, 0
        %973 = vst.msk [vmem:[#allocation2 + $0x14] sm:$0xf] %vm515, 0
        %974 = vst.msk [vmem:[#allocation2 + $0x18] sm:$0xf] %vm515, 0
      $region60: #{bottleneck_forward.1} parent=55 // pred_fallthru
        _
      %p975 = scmp.eq.s32.totalorder %s25, 1
      // Predicated region
      $region61: #{bottleneck_forward.1} parent=55 // pred_check
        %p976 = pneg %p975
      $region62: #{bottleneck_forward.1} parent=55 // pred_check_branch
        %978 = sbr.rel (%p976) target = $region64
      $region63: #{bottleneck_forward.1} parent=55 // pred_region
        %979 = vst.msk [vmem:[%s962 + $0x4] sm:$0xf] %vm515, 0
        %980 = vst.msk [vmem:[%s962 + $0x8] sm:$0xf] %vm515, 0
        %981 = vst.msk [vmem:[%s962 + $0x14] sm:$0xf] %vm515, 0
        %982 = vst.msk [vmem:[%s962 + $0x18] sm:$0xf] %vm515, 0
      $region64: #{bottleneck_forward.1} parent=55 // pred_fallthru
        _
      %v983 = vld [vmem:[#allocation2] sm:$0x8]
      %v984 = vld [vmem:[#allocation2 + $0x4] sm:$0xf]
      %v985 = vld [vmem:[#allocation2 + $0x8] sm:$0x7]
      %v986 = vld [vmem:[#allocation2 + $0x10] sm:$0x8]
      %v987 = vld [vmem:[#allocation2 + $0x14] sm:$0xf]
      %v988 = vld [vmem:[#allocation2 + $0x18] sm:$0x7]
      %v989 = vld [vmem:[#allocation2 + $0x20] sm:$0x8]
      %v990 = vld [vmem:[#allocation2 + $0x24] sm:$0xf]
      %v991 = vld [vmem:[#allocation2 + $0x28] sm:$0x7]
      %v992 = vld [vmem:[#allocation2 + $0x30] sm:$0x8]
      %v993 = vld [vmem:[#allocation2 + $0x34] sm:$0xf]
      %v994 = vld [vmem:[#allocation2 + $0x38] sm:$0x7]
      %v995 = vld [vmem:[#allocation2 + $0x40] sm:$0x8]
      %v996 = vld [vmem:[#allocation2 + $0x44] sm:$0xf]
      %v997 = vld [vmem:[#allocation2 + $0x48] sm:$0x7]
      %v998 = vld [vmem:[#allocation2 + $0x50] sm:$0x8]
      %v999 = vld [vmem:[#allocation2 + $0x54] sm:$0xf]
      %v1000 = vld [vmem:[#allocation2 + $0x58] sm:$0x7]
      %v1001 = vld [vmem:[#allocation2 + $0x60] sm:$0x8]
      %v1002 = vld [vmem:[#allocation2 + $0x64] sm:$0xf]
      %v1003 = vld [vmem:[#allocation2 + $0x68] sm:$0x7]
      %v1004 = vld [vmem:[#allocation2 + $0x70] sm:$0x8]
      %v1005 = vld [vmem:[#allocation2 + $0x74] sm:$0xf]
      %v1006 = vld [vmem:[#allocation2 + $0x78] sm:$0x7]
      %vm1031 = vcmask 1040384
      %vm1032 = vcmask 1044484
      %vm1033 = vmor %vm1031, %vm1032
      %v1034 = vrot.slane %v983, 7
      %v1035 = vrot.slane %v1034, 4
      %v1036 = vrot.slane %v984, 7
      %v1037 = vsel %vm1033, %v1035, %v1036
      %v1038 = vrot.slane %v1036, 4
      %v1039 = vrot.slane %v985, 7
      %v1040 = vsel %vm1033, %v1038, %v1039
      %v1041 = vrot.slane %v986, 7
      %v1042 = vrot.slane %v1041, 4
      %v1043 = vrot.slane %v987, 7
      %v1044 = vsel %vm1033, %v1042, %v1043
      %v1045 = vrot.slane %v1043, 4
      %v1046 = vrot.slane %v988, 7
      %v1047 = vsel %vm1033, %v1045, %v1046
      %v1048 = vrot.slane %v989, 7
      %v1049 = vrot.slane %v1048, 4
      %v1050 = vrot.slane %v990, 7
      %v1051 = vsel %vm1033, %v1049, %v1050
      %v1052 = vrot.slane %v1050, 4
      %v1053 = vrot.slane %v991, 7
      %v1054 = vsel %vm1033, %v1052, %v1053
      %v1055 = vrot.slane %v992, 7
      %v1056 = vrot.slane %v1055, 4
      %v1057 = vrot.slane %v993, 7
      %v1058 = vsel %vm1033, %v1056, %v1057
      %v1059 = vrot.slane %v1057, 4
      %v1060 = vrot.slane %v994, 7
      %v1061 = vsel %vm1033, %v1059, %v1060
      %v1062 = vrot.slane %v995, 7
      %v1063 = vrot.slane %v1062, 4
      %v1064 = vrot.slane %v996, 7
      %v1065 = vsel %vm1033, %v1063, %v1064
      %v1066 = vrot.slane %v1064, 4
      %v1067 = vrot.slane %v997, 7
      %v1068 = vsel %vm1033, %v1066, %v1067
      %v1069 = vrot.slane %v998, 7
      %v1070 = vrot.slane %v1069, 4
      %v1071 = vrot.slane %v999, 7
      %v1072 = vsel %vm1033, %v1070, %v1071
      %v1073 = vrot.slane %v1071, 4
      %v1074 = vrot.slane %v1000, 7
      %v1075 = vsel %vm1033, %v1073, %v1074
      %v1076 = vrot.slane %v1001, 7
      %v1077 = vrot.slane %v1076, 4
      %v1078 = vrot.slane %v1002, 7
      %v1079 = vsel %vm1033, %v1077, %v1078
      %v1080 = vrot.slane %v1078, 4
      %v1081 = vrot.slane %v1003, 7
      %v1082 = vsel %vm1033, %v1080, %v1081
      %v1083 = vrot.slane %v1004, 7
      %v1084 = vrot.slane %v1083, 4
      %v1085 = vrot.slane %v1005, 7
      %v1086 = vsel %vm1033, %v1084, %v1085
      %v1087 = vrot.slane %v1085, 4
      %v1088 = vrot.slane %v1006, 7
      %v1089 = vsel %vm1033, %v1087, %v1088
      %v1090 = vunpack.c.l.b16 %v1037
      %v1091 = vunpack.c.l.b16 %v1040
      %v1092 = vunpack.c.l.b16 %v1044
      %v1093 = vunpack.c.l.b16 %v1047
      %v1094 = vunpack.c.l.b16 %v1051
      %v1095 = vunpack.c.l.b16 %v1054
      %v1096 = vunpack.c.l.b16 %v1058
      %v1097 = vunpack.c.l.b16 %v1061
      %v1098 = vunpack.c.l.b16 %v1065
      %v1099 = vunpack.c.l.b16 %v1068
      %v1100 = vunpack.c.l.b16 %v1072
      %v1101 = vunpack.c.l.b16 %v1075
      %v1102 = vunpack.c.l.b16 %v1079
      %v1103 = vunpack.c.l.b16 %v1082
      %v1104 = vunpack.c.l.b16 %v1086
      %v1105 = vunpack.c.l.b16 %v1089
      %v1106 = vpack.c.b16 %v1091, %v1090
      %v1107 = vpack.c.b16 %v1093, %v1092
      %v1108 = vpack.c.b16 %v1095, %v1094
      %v1109 = vpack.c.b16 %v1097, %v1096
      %v1110 = vpack.c.b16 %v1099, %v1098
      %v1111 = vpack.c.b16 %v1101, %v1100
      %v1112 = vpack.c.b16 %v1103, %v1102
      %v1113 = vpack.c.b16 %v1105, %v1104
      %vm1122 = vcmask 31744
      %1123 = vst.msk [vmem:[#allocation3] sm:$0xff] %vm1122, %v1106
      %1124 = vst.msk [vmem:[#allocation3 + $0x8] sm:$0xff] %vm1122, %v1107
      %1125 = vst.msk [vmem:[#allocation3 + $0x10] sm:$0xff] %vm1122, %v1108
      %1126 = vst.msk [vmem:[#allocation3 + $0x18] sm:$0xff] %vm1122, %v1109
      %1127 = vst.msk [vmem:[#allocation3 + $0x20] sm:$0xff] %vm1122, %v1110
      %1128 = vst.msk [vmem:[#allocation3 + $0x28] sm:$0xff] %vm1122, %v1111
      %1129 = vst.msk [vmem:[#allocation3 + $0x30] sm:$0xff] %vm1122, %v1112
      %1130 = vst.msk [vmem:[#allocation3 + $0x38] sm:$0xff] %vm1122, %v1113
      %v1131 = vld [vmem:[#allocation2 + $0x4] sm:$0xf]
      %v1132 = vld [vmem:[#allocation2 + $0x8] sm:$0xf]
      %v1133 = vld [vmem:[#allocation2 + $0x14] sm:$0xf]
      %v1134 = vld [vmem:[#allocation2 + $0x18] sm:$0xf]
      %v1135 = vld [vmem:[#allocation2 + $0x24] sm:$0xf]
      %v1136 = vld [vmem:[#allocation2 + $0x28] sm:$0xf]
      %v1137 = vld [vmem:[#allocation2 + $0x34] sm:$0xf]
      %v1138 = vld [vmem:[#allocation2 + $0x38] sm:$0xf]
      %v1139 = vld [vmem:[#allocation2 + $0x44] sm:$0xf]
      %v1140 = vld [vmem:[#allocation2 + $0x48] sm:$0xf]
      %v1141 = vld [vmem:[#allocation2 + $0x54] sm:$0xf]
      %v1142 = vld [vmem:[#allocation2 + $0x58] sm:$0xf]
      %v1143 = vld [vmem:[#allocation2 + $0x64] sm:$0xf]
      %v1144 = vld [vmem:[#allocation2 + $0x68] sm:$0xf]
      %v1145 = vld [vmem:[#allocation2 + $0x74] sm:$0xf]
      %v1146 = vld [vmem:[#allocation2 + $0x78] sm:$0xf]
      %v1163 = vunpack.c.l.b16 %v1131
      %v1164 = vunpack.c.l.b16 %v1132
      %v1165 = vunpack.c.l.b16 %v1133
      %v1166 = vunpack.c.l.b16 %v1134
      %v1167 = vunpack.c.l.b16 %v1135
      %v1168 = vunpack.c.l.b16 %v1136
      %v1169 = vunpack.c.l.b16 %v1137
      %v1170 = vunpack.c.l.b16 %v1138
      %v1171 = vunpack.c.l.b16 %v1139
      %v1172 = vunpack.c.l.b16 %v1140
      %v1173 = vunpack.c.l.b16 %v1141
      %v1174 = vunpack.c.l.b16 %v1142
      %v1175 = vunpack.c.l.b16 %v1143
      %v1176 = vunpack.c.l.b16 %v1144
      %v1177 = vunpack.c.l.b16 %v1145
      %v1178 = vunpack.c.l.b16 %v1146
      %v1179 = vpack.c.b16 %v1164, %v1163
      %v1180 = vpack.c.b16 %v1166, %v1165
      %v1181 = vpack.c.b16 %v1168, %v1167
      %v1182 = vpack.c.b16 %v1170, %v1169
      %v1183 = vpack.c.b16 %v1172, %v1171
      %v1184 = vpack.c.b16 %v1174, %v1173
      %v1185 = vpack.c.b16 %v1176, %v1175
      %v1186 = vpack.c.b16 %v1178, %v1177
      %1187 = vrot.lane.b32.xlu0 %v1179, 4
      %v1188 = vpop.permute.xlu0 %1187
      %1189 = vrot.lane.b32.xlu0 %v1180, 4
      %v1190 = vpop.permute.xlu0 %1189
      %1191 = vrot.lane.b32.xlu0 %v1181, 4
      %v1192 = vpop.permute.xlu0 %1191
      %1193 = vrot.lane.b32.xlu0 %v1182, 4
      %v1194 = vpop.permute.xlu0 %1193
      %1195 = vrot.lane.b32.xlu0 %v1183, 4
      %v1196 = vpop.permute.xlu0 %1195
      %1197 = vrot.lane.b32.xlu0 %v1184, 4
      %v1198 = vpop.permute.xlu0 %1197
      %1199 = vrot.lane.b32.xlu0 %v1185, 4
      %v1200 = vpop.permute.xlu0 %1199
      %1201 = vrot.lane.b32.xlu0 %v1186, 4
      %v1202 = vpop.permute.xlu0 %1201
      %vm1211 = vcmask 64544
      %1212 = vst.msk [vmem:[#allocation3] sm:$0xff] %vm1211, %v1188
      %1213 = vst.msk [vmem:[#allocation3 + $0x8] sm:$0xff] %vm1211, %v1190
      %1214 = vst.msk [vmem:[#allocation3 + $0x10] sm:$0xff] %vm1211, %v1192
      %1215 = vst.msk [vmem:[#allocation3 + $0x18] sm:$0xff] %vm1211, %v1194
      %1216 = vst.msk [vmem:[#allocation3 + $0x20] sm:$0xff] %vm1211, %v1196
      %1217 = vst.msk [vmem:[#allocation3 + $0x28] sm:$0xff] %vm1211, %v1198
      %1218 = vst.msk [vmem:[#allocation3 + $0x30] sm:$0xff] %vm1211, %v1200
      %1219 = vst.msk [vmem:[#allocation3 + $0x38] sm:$0xff] %vm1211, %v1202
      %v1220 = vld [vmem:[#allocation2 + $0x4] sm:$0xe]
      %v1221 = vld [vmem:[#allocation2 + $0x8] sm:$0xf]
      %v1222 = vld [vmem:[#allocation2 + $0xc] sm:$0x1]
      %v1223 = vld [vmem:[#allocation2 + $0x14] sm:$0xe]
      %v1224 = vld [vmem:[#allocation2 + $0x18] sm:$0xf]
      %v1225 = vld [vmem:[#allocation2 + $0x1c] sm:$0x1]
      %v1226 = vld [vmem:[#allocation2 + $0x24] sm:$0xe]
      %v1227 = vld [vmem:[#allocation2 + $0x28] sm:$0xf]
      %v1228 = vld [vmem:[#allocation2 + $0x2c] sm:$0x1]
      %v1229 = vld [vmem:[#allocation2 + $0x34] sm:$0xe]
      %v1230 = vld [vmem:[#allocation2 + $0x38] sm:$0xf]
      %v1231 = vld [vmem:[#allocation2 + $0x3c] sm:$0x1]
      %v1232 = vld [vmem:[#allocation2 + $0x44] sm:$0xe]
      %v1233 = vld [vmem:[#allocation2 + $0x48] sm:$0xf]
      %v1234 = vld [vmem:[#allocation2 + $0x4c] sm:$0x1]
      %v1235 = vld [vmem:[#allocation2 + $0x54] sm:$0xe]
      %v1236 = vld [vmem:[#allocation2 + $0x58] sm:$0xf]
      %v1237 = vld [vmem:[#allocation2 + $0x5c] sm:$0x1]
      %v1238 = vld [vmem:[#allocation2 + $0x64] sm:$0xe]
      %v1239 = vld [vmem:[#allocation2 + $0x68] sm:$0xf]
      %v1240 = vld [vmem:[#allocation2 + $0x6c] sm:$0x1]
      %v1241 = vld [vmem:[#allocation2 + $0x74] sm:$0xe]
      %v1242 = vld [vmem:[#allocation2 + $0x78] sm:$0xf]
      %v1243 = vld [vmem:[#allocation2 + $0x7c] sm:$0x1]
      %vm1268 = vcmask 1042432
      %vm1269 = vcmask 1046532
      %vm1270 = vmor %vm1268, %vm1269
      %v1271 = vrot.slane %v1220, 5
      %v1272 = vrot.slane %v1271, 4
      %v1273 = vrot.slane %v1221, 5
      %v1274 = vsel %vm1270, %v1272, %v1273
      %v1275 = vrot.slane %v1273, 4
      %v1276 = vrot.slane %v1222, 5
      %v1277 = vsel %vm1270, %v1275, %v1276
      %v1278 = vrot.slane %v1223, 5
      %v1279 = vrot.slane %v1278, 4
      %v1280 = vrot.slane %v1224, 5
      %v1281 = vsel %vm1270, %v1279, %v1280
      %v1282 = vrot.slane %v1280, 4
      %v1283 = vrot.slane %v1225, 5
      %v1284 = vsel %vm1270, %v1282, %v1283
      %v1285 = vrot.slane %v1226, 5
      %v1286 = vrot.slane %v1285, 4
      %v1287 = vrot.slane %v1227, 5
      %v1288 = vsel %vm1270, %v1286, %v1287
      %v1289 = vrot.slane %v1287, 4
      %v1290 = vrot.slane %v1228, 5
      %v1291 = vsel %vm1270, %v1289, %v1290
      %v1292 = vrot.slane %v1229, 5
      %v1293 = vrot.slane %v1292, 4
      %v1294 = vrot.slane %v1230, 5
      %v1295 = vsel %vm1270, %v1293, %v1294
      %v1296 = vrot.slane %v1294, 4
      %v1297 = vrot.slane %v1231, 5
      %v1298 = vsel %vm1270, %v1296, %v1297
      %v1299 = vrot.slane %v1232, 5
      %v1300 = vrot.slane %v1299, 4
      %v1301 = vrot.slane %v1233, 5
      %v1302 = vsel %vm1270, %v1300, %v1301
      %v1303 = vrot.slane %v1301, 4
      %v1304 = vrot.slane %v1234, 5
      %v1305 = vsel %vm1270, %v1303, %v1304
      %v1306 = vrot.slane %v1235, 5
      %v1307 = vrot.slane %v1306, 4
      %v1308 = vrot.slane %v1236, 5
      %v1309 = vsel %vm1270, %v1307, %v1308
      %v1310 = vrot.slane %v1308, 4
      %v1311 = vrot.slane %v1237, 5
      %v1312 = vsel %vm1270, %v1310, %v1311
      %v1313 = vrot.slane %v1238, 5
      %v1314 = vrot.slane %v1313, 4
      %v1315 = vrot.slane %v1239, 5
      %v1316 = vsel %vm1270, %v1314, %v1315
      %v1317 = vrot.slane %v1315, 4
      %v1318 = vrot.slane %v1240, 5
      %v1319 = vsel %vm1270, %v1317, %v1318
      %v1320 = vrot.slane %v1241, 5
      %v1321 = vrot.slane %v1320, 4
      %v1322 = vrot.slane %v1242, 5
      %v1323 = vsel %vm1270, %v1321, %v1322
      %v1324 = vrot.slane %v1322, 4
      %v1325 = vrot.slane %v1243, 5
      %v1326 = vsel %vm1270, %v1324, %v1325
      %v1327 = vunpack.c.l.b16 %v1274
      %v1328 = vunpack.c.l.b16 %v1277
      %v1329 = vunpack.c.l.b16 %v1281
      %v1330 = vunpack.c.l.b16 %v1284
      %v1331 = vunpack.c.l.b16 %v1288
      %v1332 = vunpack.c.l.b16 %v1291
      %v1333 = vunpack.c.l.b16 %v1295
      %v1334 = vunpack.c.l.b16 %v1298
      %v1335 = vunpack.c.l.b16 %v1302
      %v1336 = vunpack.c.l.b16 %v1305
      %v1337 = vunpack.c.l.b16 %v1309
      %v1338 = vunpack.c.l.b16 %v1312
      %v1339 = vunpack.c.l.b16 %v1316
      %v1340 = vunpack.c.l.b16 %v1319
      %v1341 = vunpack.c.l.b16 %v1323
      %v1342 = vunpack.c.l.b16 %v1326
      %v1343 = vpack.c.b16 %v1328, %v1327
      %v1344 = vpack.c.b16 %v1330, %v1329
      %v1345 = vpack.c.b16 %v1332, %v1331
      %v1346 = vpack.c.b16 %v1334, %v1333
      %v1347 = vpack.c.b16 %v1336, %v1335
      %v1348 = vpack.c.b16 %v1338, %v1337
      %v1349 = vpack.c.b16 %v1340, %v1339
      %v1350 = vpack.c.b16 %v1342, %v1341
      %1351 = vrot.lane.b32.xlu0 %v1343, 8
      %v1352 = vpop.permute.xlu0 %1351
      %1353 = vrot.lane.b32.xlu0 %v1344, 8
      %v1354 = vpop.permute.xlu0 %1353
      %1355 = vrot.lane.b32.xlu0 %v1345, 8
      %v1356 = vpop.permute.xlu0 %1355
      %1357 = vrot.lane.b32.xlu0 %v1346, 8
      %v1358 = vpop.permute.xlu0 %1357
      %1359 = vrot.lane.b32.xlu0 %v1347, 8
      %v1360 = vpop.permute.xlu0 %1359
      %1361 = vrot.lane.b32.xlu0 %v1348, 8
      %v1362 = vpop.permute.xlu0 %1361
      %1363 = vrot.lane.b32.xlu0 %v1349, 8
      %v1364 = vpop.permute.xlu0 %1363
      %1365 = vrot.lane.b32.xlu0 %v1350, 8
      %v1366 = vpop.permute.xlu0 %1365
      %vm1375 = vcmask 97344
      %1376 = vst.msk [vmem:[#allocation3] sm:$0xff] %vm1375, %v1352
      %1377 = vst.msk [vmem:[#allocation3 + $0x8] sm:$0xff] %vm1375, %v1354
      %1378 = vst.msk [vmem:[#allocation3 + $0x10] sm:$0xff] %vm1375, %v1356
      %1379 = vst.msk [vmem:[#allocation3 + $0x18] sm:$0xff] %vm1375, %v1358
      %1380 = vst.msk [vmem:[#allocation3 + $0x20] sm:$0xff] %vm1375, %v1360
      %1381 = vst.msk [vmem:[#allocation3 + $0x28] sm:$0xff] %vm1375, %v1362
      %1382 = vst.msk [vmem:[#allocation3 + $0x30] sm:$0xff] %vm1375, %v1364
      %1383 = vst.msk [vmem:[#allocation3 + $0x38] sm:$0xff] %vm1375, %v1366
      %v1384 = vld [vmem:[%s779] sm:$0x8]
      %v1385 = vld [vmem:[%s779 + $0x4] sm:$0xf]
      %v1386 = vld [vmem:[%s779 + $0x8] sm:$0x7]
      %v1387 = vld [vmem:[%s779 + $0x10] sm:$0x8]
      %v1388 = vld [vmem:[%s779 + $0x14] sm:$0xf]
      %v1389 = vld [vmem:[%s779 + $0x18] sm:$0x7]
      %v1390 = vld [vmem:[%s779 + $0x20] sm:$0x8]
      %v1391 = vld [vmem:[%s779 + $0x24] sm:$0xf]
      %v1392 = vld [vmem:[%s779 + $0x28] sm:$0x7]
      %v1393 = vld [vmem:[%s779 + $0x30] sm:$0x8]
      %v1394 = vld [vmem:[%s779 + $0x34] sm:$0xf]
      %v1395 = vld [vmem:[%s779 + $0x38] sm:$0x7]
      %v1396 = vld [vmem:[%s779 + $0x40] sm:$0x8]
      %v1397 = vld [vmem:[%s779 + $0x44] sm:$0xf]
      %v1398 = vld [vmem:[%s779 + $0x48] sm:$0x7]
      %v1399 = vld [vmem:[%s779 + $0x50] sm:$0x8]
      %v1400 = vld [vmem:[%s779 + $0x54] sm:$0xf]
      %v1401 = vld [vmem:[%s779 + $0x58] sm:$0x7]
      %v1402 = vld [vmem:[%s779 + $0x60] sm:$0x8]
      %v1403 = vld [vmem:[%s779 + $0x64] sm:$0xf]
      %v1404 = vld [vmem:[%s779 + $0x68] sm:$0x7]
      %v1405 = vld [vmem:[%s779 + $0x70] sm:$0x8]
      %v1406 = vld [vmem:[%s779 + $0x74] sm:$0xf]
      %v1407 = vld [vmem:[%s779 + $0x78] sm:$0x7]
      %v1432 = vrot.slane %v1384, 7
      %v1433 = vrot.slane %v1432, 4
      %v1434 = vrot.slane %v1385, 7
      %v1435 = vsel %vm1033, %v1433, %v1434
      %v1436 = vrot.slane %v1434, 4
      %v1437 = vrot.slane %v1386, 7
      %v1438 = vsel %vm1033, %v1436, %v1437
      %v1439 = vrot.slane %v1387, 7
      %v1440 = vrot.slane %v1439, 4
      %v1441 = vrot.slane %v1388, 7
      %v1442 = vsel %vm1033, %v1440, %v1441
      %v1443 = vrot.slane %v1441, 4
      %v1444 = vrot.slane %v1389, 7
      %v1445 = vsel %vm1033, %v1443, %v1444
      %v1446 = vrot.slane %v1390, 7
      %v1447 = vrot.slane %v1446, 4
      %v1448 = vrot.slane %v1391, 7
      %v1449 = vsel %vm1033, %v1447, %v1448
      %v1450 = vrot.slane %v1448, 4
      %v1451 = vrot.slane %v1392, 7
      %v1452 = vsel %vm1033, %v1450, %v1451
      %v1453 = vrot.slane %v1393, 7
      %v1454 = vrot.slane %v1453, 4
      %v1455 = vrot.slane %v1394, 7
      %v1456 = vsel %vm1033, %v1454, %v1455
      %v1457 = vrot.slane %v1455, 4
      %v1458 = vrot.slane %v1395, 7
      %v1459 = vsel %vm1033, %v1457, %v1458
      %v1460 = vrot.slane %v1396, 7
      %v1461 = vrot.slane %v1460, 4
      %v1462 = vrot.slane %v1397, 7
      %v1463 = vsel %vm1033, %v1461, %v1462
      %v1464 = vrot.slane %v1462, 4
      %v1465 = vrot.slane %v1398, 7
      %v1466 = vsel %vm1033, %v1464, %v1465
      %v1467 = vrot.slane %v1399, 7
      %v1468 = vrot.slane %v1467, 4
      %v1469 = vrot.slane %v1400, 7
      %v1470 = vsel %vm1033, %v1468, %v1469
      %v1471 = vrot.slane %v1469, 4
      %v1472 = vrot.slane %v1401, 7
      %v1473 = vsel %vm1033, %v1471, %v1472
      %v1474 = vrot.slane %v1402, 7
      %v1475 = vrot.slane %v1474, 4
      %v1476 = vrot.slane %v1403, 7
      %v1477 = vsel %vm1033, %v1475, %v1476
      %v1478 = vrot.slane %v1476, 4
      %v1479 = vrot.slane %v1404, 7
      %v1480 = vsel %vm1033, %v1478, %v1479
      %v1481 = vrot.slane %v1405, 7
      %v1482 = vrot.slane %v1481, 4
      %v1483 = vrot.slane %v1406, 7
      %v1484 = vsel %vm1033, %v1482, %v1483
      %v1485 = vrot.slane %v1483, 4
      %v1486 = vrot.slane %v1407, 7
      %v1487 = vsel %vm1033, %v1485, %v1486
      %v1488 = vunpack.c.l.b16 %v1435
      %v1489 = vunpack.c.l.b16 %v1438
      %v1490 = vunpack.c.l.b16 %v1442
      %v1491 = vunpack.c.l.b16 %v1445
      %v1492 = vunpack.c.l.b16 %v1449
      %v1493 = vunpack.c.l.b16 %v1452
      %v1494 = vunpack.c.l.b16 %v1456
      %v1495 = vunpack.c.l.b16 %v1459
      %v1496 = vunpack.c.l.b16 %v1463
      %v1497 = vunpack.c.l.b16 %v1466
      %v1498 = vunpack.c.l.b16 %v1470
      %v1499 = vunpack.c.l.b16 %v1473
      %v1500 = vunpack.c.l.b16 %v1477
      %v1501 = vunpack.c.l.b16 %v1480
      %v1502 = vunpack.c.l.b16 %v1484
      %v1503 = vunpack.c.l.b16 %v1487
      %v1504 = vpack.c.b16 %v1489, %v1488
      %v1505 = vpack.c.b16 %v1491, %v1490
      %v1506 = vpack.c.b16 %v1493, %v1492
      %v1507 = vpack.c.b16 %v1495, %v1494
      %v1508 = vpack.c.b16 %v1497, %v1496
      %v1509 = vpack.c.b16 %v1499, %v1498
      %v1510 = vpack.c.b16 %v1501, %v1500
      %v1511 = vpack.c.b16 %v1503, %v1502
      %1512 = vrot.lane.b32.xlu0 %v1504, 12
      %v1513 = vpop.permute.xlu0 %1512
      %1514 = vrot.lane.b32.xlu0 %v1505, 12
      %v1515 = vpop.permute.xlu0 %1514
      %1516 = vrot.lane.b32.xlu0 %v1506, 12
      %v1517 = vpop.permute.xlu0 %1516
      %1518 = vrot.lane.b32.xlu0 %v1507, 12
      %v1519 = vpop.permute.xlu0 %1518
      %1520 = vrot.lane.b32.xlu0 %v1508, 12
      %v1521 = vpop.permute.xlu0 %1520
      %1522 = vrot.lane.b32.xlu0 %v1509, 12
      %v1523 = vpop.permute.xlu0 %1522
      %1524 = vrot.lane.b32.xlu0 %v1510, 12
      %v1525 = vpop.permute.xlu0 %1524
      %1526 = vrot.lane.b32.xlu0 %v1511, 12
      %v1527 = vpop.permute.xlu0 %1526
      %vm1536 = vcmask 130144
      %1537 = vst.msk [vmem:[#allocation3] sm:$0xff] %vm1536, %v1513
      %1538 = vst.msk [vmem:[#allocation3 + $0x8] sm:$0xff] %vm1536, %v1515
      %1539 = vst.msk [vmem:[#allocation3 + $0x10] sm:$0xff] %vm1536, %v1517
      %1540 = vst.msk [vmem:[#allocation3 + $0x18] sm:$0xff] %vm1536, %v1519
      %1541 = vst.msk [vmem:[#allocation3 + $0x20] sm:$0xff] %vm1536, %v1521
      %1542 = vst.msk [vmem:[#allocation3 + $0x28] sm:$0xff] %vm1536, %v1523
      %1543 = vst.msk [vmem:[#allocation3 + $0x30] sm:$0xff] %vm1536, %v1525
      %1544 = vst.msk [vmem:[#allocation3 + $0x38] sm:$0xff] %vm1536, %v1527
      %v1545 = vld [vmem:[%s779 + $0x4] sm:$0xf]
      %v1546 = vld [vmem:[%s779 + $0x8] sm:$0xf]
      %v1547 = vld [vmem:[%s779 + $0x14] sm:$0xf]
      %v1548 = vld [vmem:[%s779 + $0x18] sm:$0xf]
      %v1549 = vld [vmem:[%s779 + $0x24] sm:$0xf]
      %v1550 = vld [vmem:[%s779 + $0x28] sm:$0xf]
      %v1551 = vld [vmem:[%s779 + $0x34] sm:$0xf]
      %v1552 = vld [vmem:[%s779 + $0x38] sm:$0xf]
      %v1553 = vld [vmem:[%s779 + $0x44] sm:$0xf]
      %v1554 = vld [vmem:[%s779 + $0x48] sm:$0xf]
      %v1555 = vld [vmem:[%s779 + $0x54] sm:$0xf]
      %v1556 = vld [vmem:[%s779 + $0x58] sm:$0xf]
      %v1557 = vld [vmem:[%s779 + $0x64] sm:$0xf]
      %v1558 = vld [vmem:[%s779 + $0x68] sm:$0xf]
      %v1559 = vld [vmem:[%s779 + $0x74] sm:$0xf]
      %v1560 = vld [vmem:[%s779 + $0x78] sm:$0xf]
      %v1577 = vunpack.c.l.b16 %v1545
      %v1578 = vunpack.c.l.b16 %v1546
      %v1579 = vunpack.c.l.b16 %v1547
      %v1580 = vunpack.c.l.b16 %v1548
      %v1581 = vunpack.c.l.b16 %v1549
      %v1582 = vunpack.c.l.b16 %v1550
      %v1583 = vunpack.c.l.b16 %v1551
      %v1584 = vunpack.c.l.b16 %v1552
      %v1585 = vunpack.c.l.b16 %v1553
      %v1586 = vunpack.c.l.b16 %v1554
      %v1587 = vunpack.c.l.b16 %v1555
      %v1588 = vunpack.c.l.b16 %v1556
      %v1589 = vunpack.c.l.b16 %v1557
      %v1590 = vunpack.c.l.b16 %v1558
      %v1591 = vunpack.c.l.b16 %v1559
      %v1592 = vunpack.c.l.b16 %v1560
      %v1593 = vpack.c.b16 %v1578, %v1577
      %v1594 = vpack.c.b16 %v1580, %v1579
      %v1595 = vpack.c.b16 %v1582, %v1581
      %v1596 = vpack.c.b16 %v1584, %v1583
      %v1597 = vpack.c.b16 %v1586, %v1585
      %v1598 = vpack.c.b16 %v1588, %v1587
      %v1599 = vpack.c.b16 %v1590, %v1589
      %v1600 = vpack.c.b16 %v1592, %v1591
      %1601 = vrot.lane.b32.xlu0 %v1593, 16
      %v1602 = vpop.permute.xlu0 %1601
      %1603 = vrot.lane.b32.xlu0 %v1594, 16
      %v1604 = vpop.permute.xlu0 %1603
      %1605 = vrot.lane.b32.xlu0 %v1595, 16
      %v1606 = vpop.permute.xlu0 %1605
      %1607 = vrot.lane.b32.xlu0 %v1596, 16
      %v1608 = vpop.permute.xlu0 %1607
      %1609 = vrot.lane.b32.xlu0 %v1597, 16
      %v1610 = vpop.permute.xlu0 %1609
      %1611 = vrot.lane.b32.xlu0 %v1598, 16
      %v1612 = vpop.permute.xlu0 %1611
      %1613 = vrot.lane.b32.xlu0 %v1599, 16
      %v1614 = vpop.permute.xlu0 %1613
      %1615 = vrot.lane.b32.xlu0 %v1600, 16
      %v1616 = vpop.permute.xlu0 %1615
      %vm1625 = vcmask 162944
      %1626 = vst.msk [vmem:[#allocation3] sm:$0xff] %vm1625, %v1602
      %1627 = vst.msk [vmem:[#allocation3 + $0x8] sm:$0xff] %vm1625, %v1604
      %1628 = vst.msk [vmem:[#allocation3 + $0x10] sm:$0xff] %vm1625, %v1606
      %1629 = vst.msk [vmem:[#allocation3 + $0x18] sm:$0xff] %vm1625, %v1608
      %1630 = vst.msk [vmem:[#allocation3 + $0x20] sm:$0xff] %vm1625, %v1610
      %1631 = vst.msk [vmem:[#allocation3 + $0x28] sm:$0xff] %vm1625, %v1612
      %1632 = vst.msk [vmem:[#allocation3 + $0x30] sm:$0xff] %vm1625, %v1614
      %1633 = vst.msk [vmem:[#allocation3 + $0x38] sm:$0xff] %vm1625, %v1616
      %v1634 = vld [vmem:[%s779 + $0x4] sm:$0xe]
      %v1635 = vld [vmem:[%s779 + $0x8] sm:$0xf]
      %v1636 = vld [vmem:[%s779 + $0xc] sm:$0x1]
      %v1637 = vld [vmem:[%s779 + $0x14] sm:$0xe]
      %v1638 = vld [vmem:[%s779 + $0x18] sm:$0xf]
      %v1639 = vld [vmem:[%s779 + $0x1c] sm:$0x1]
      %v1640 = vld [vmem:[%s779 + $0x24] sm:$0xe]
      %v1641 = vld [vmem:[%s779 + $0x28] sm:$0xf]
      %v1642 = vld [vmem:[%s779 + $0x2c] sm:$0x1]
      %v1643 = vld [vmem:[%s779 + $0x34] sm:$0xe]
      %v1644 = vld [vmem:[%s779 + $0x38] sm:$0xf]
      %v1645 = vld [vmem:[%s779 + $0x3c] sm:$0x1]
      %v1646 = vld [vmem:[%s779 + $0x44] sm:$0xe]
      %v1647 = vld [vmem:[%s779 + $0x48] sm:$0xf]
      %v1648 = vld [vmem:[%s779 + $0x4c] sm:$0x1]
      %v1649 = vld [vmem:[%s779 + $0x54] sm:$0xe]
      %v1650 = vld [vmem:[%s779 + $0x58] sm:$0xf]
      %v1651 = vld [vmem:[%s779 + $0x5c] sm:$0x1]
      %v1652 = vld [vmem:[%s779 + $0x64] sm:$0xe]
      %v1653 = vld [vmem:[%s779 + $0x68] sm:$0xf]
      %v1654 = vld [vmem:[%s779 + $0x6c] sm:$0x1]
      %v1655 = vld [vmem:[%s779 + $0x74] sm:$0xe]
      %v1656 = vld [vmem:[%s779 + $0x78] sm:$0xf]
      %v1657 = vld [vmem:[%s779 + $0x7c] sm:$0x1]
      %v1682 = vrot.slane %v1634, 5
      %v1683 = vrot.slane %v1682, 4
      %v1684 = vrot.slane %v1635, 5
      %v1685 = vsel %vm1270, %v1683, %v1684
      %v1686 = vrot.slane %v1684, 4
      %v1687 = vrot.slane %v1636, 5
      %v1688 = vsel %vm1270, %v1686, %v1687
      %v1689 = vrot.slane %v1637, 5
      %v1690 = vrot.slane %v1689, 4
      %v1691 = vrot.slane %v1638, 5
      %v1692 = vsel %vm1270, %v1690, %v1691
      %v1693 = vrot.slane %v1691, 4
      %v1694 = vrot.slane %v1639, 5
      %v1695 = vsel %vm1270, %v1693, %v1694
      %v1696 = vrot.slane %v1640, 5
      %v1697 = vrot.slane %v1696, 4
      %v1698 = vrot.slane %v1641, 5
      %v1699 = vsel %vm1270, %v1697, %v1698
      %v1700 = vrot.slane %v1698, 4
      %v1701 = vrot.slane %v1642, 5
      %v1702 = vsel %vm1270, %v1700, %v1701
      %v1703 = vrot.slane %v1643, 5
      %v1704 = vrot.slane %v1703, 4
      %v1705 = vrot.slane %v1644, 5
      %v1706 = vsel %vm1270, %v1704, %v1705
      %v1707 = vrot.slane %v1705, 4
      %v1708 = vrot.slane %v1645, 5
      %v1709 = vsel %vm1270, %v1707, %v1708
      %v1710 = vrot.slane %v1646, 5
      %v1711 = vrot.slane %v1710, 4
      %v1712 = vrot.slane %v1647, 5
      %v1713 = vsel %vm1270, %v1711, %v1712
      %v1714 = vrot.slane %v1712, 4
      %v1715 = vrot.slane %v1648, 5
      %v1716 = vsel %vm1270, %v1714, %v1715
      %v1717 = vrot.slane %v1649, 5
      %v1718 = vrot.slane %v1717, 4
      %v1719 = vrot.slane %v1650, 5
      %v1720 = vsel %vm1270, %v1718, %v1719
      %v1721 = vrot.slane %v1719, 4
      %v1722 = vrot.slane %v1651, 5
      %v1723 = vsel %vm1270, %v1721, %v1722
      %v1724 = vrot.slane %v1652, 5
      %v1725 = vrot.slane %v1724, 4
      %v1726 = vrot.slane %v1653, 5
      %v1727 = vsel %vm1270, %v1725, %v1726
      %v1728 = vrot.slane %v1726, 4
      %v1729 = vrot.slane %v1654, 5
      %v1730 = vsel %vm1270, %v1728, %v1729
      %v1731 = vrot.slane %v1655, 5
      %v1732 = vrot.slane %v1731, 4
      %v1733 = vrot.slane %v1656, 5
      %v1734 = vsel %vm1270, %v1732, %v1733
      %v1735 = vrot.slane %v1733, 4
      %v1736 = vrot.slane %v1657, 5
      %v1737 = vsel %vm1270, %v1735, %v1736
      %v1738 = vunpack.c.l.b16 %v1685
      %v1739 = vunpack.c.l.b16 %v1688
      %v1740 = vunpack.c.l.b16 %v1692
      %v1741 = vunpack.c.l.b16 %v1695
      %v1742 = vunpack.c.l.b16 %v1699
      %v1743 = vunpack.c.l.b16 %v1702
      %v1744 = vunpack.c.l.b16 %v1706
      %v1745 = vunpack.c.l.b16 %v1709
      %v1746 = vunpack.c.l.b16 %v1713
      %v1747 = vunpack.c.l.b16 %v1716
      %v1748 = vunpack.c.l.b16 %v1720
      %v1749 = vunpack.c.l.b16 %v1723
      %v1750 = vunpack.c.l.b16 %v1727
      %v1751 = vunpack.c.l.b16 %v1730
      %v1752 = vunpack.c.l.b16 %v1734
      %v1753 = vunpack.c.l.b16 %v1737
      %v1754 = vpack.c.b16 %v1739, %v1738
      %v1755 = vpack.c.b16 %v1741, %v1740
      %v1756 = vpack.c.b16 %v1743, %v1742
      %v1757 = vpack.c.b16 %v1745, %v1744
      %v1758 = vpack.c.b16 %v1747, %v1746
      %v1759 = vpack.c.b16 %v1749, %v1748
      %v1760 = vpack.c.b16 %v1751, %v1750
      %v1761 = vpack.c.b16 %v1753, %v1752
      %1762 = vrot.lane.b32.xlu0 %v1754, 20
      %v1763 = vpop.permute.xlu0 %1762
      %1764 = vrot.lane.b32.xlu0 %v1755, 20
      %v1765 = vpop.permute.xlu0 %1764
      %1766 = vrot.lane.b32.xlu0 %v1756, 20
      %v1767 = vpop.permute.xlu0 %1766
      %1768 = vrot.lane.b32.xlu0 %v1757, 20
      %v1769 = vpop.permute.xlu0 %1768
      %1770 = vrot.lane.b32.xlu0 %v1758, 20
      %v1771 = vpop.permute.xlu0 %1770
      %1772 = vrot.lane.b32.xlu0 %v1759, 20
      %v1773 = vpop.permute.xlu0 %1772
      %1774 = vrot.lane.b32.xlu0 %v1760, 20
      %v1775 = vpop.permute.xlu0 %1774
      %1776 = vrot.lane.b32.xlu0 %v1761, 20
      %v1777 = vpop.permute.xlu0 %1776
      %vm1786 = vcmask 195744
      %1787 = vst.msk [vmem:[#allocation3] sm:$0xff] %vm1786, %v1763
      %1788 = vst.msk [vmem:[#allocation3 + $0x8] sm:$0xff] %vm1786, %v1765
      %1789 = vst.msk [vmem:[#allocation3 + $0x10] sm:$0xff] %vm1786, %v1767
      %1790 = vst.msk [vmem:[#allocation3 + $0x18] sm:$0xff] %vm1786, %v1769
      %1791 = vst.msk [vmem:[#allocation3 + $0x20] sm:$0xff] %vm1786, %v1771
      %1792 = vst.msk [vmem:[#allocation3 + $0x28] sm:$0xff] %vm1786, %v1773
      %1793 = vst.msk [vmem:[#allocation3 + $0x30] sm:$0xff] %vm1786, %v1775
      %1794 = vst.msk [vmem:[#allocation3 + $0x38] sm:$0xff] %vm1786, %v1777
      %s1795 = scalar_lea.vmem [#allocation2], 64
      %v1796 = vld [vmem:[%s1795] sm:$0x8]
      %v1797 = vld [vmem:[%s1795 + $0x4] sm:$0xf]
      %v1798 = vld [vmem:[%s1795 + $0x8] sm:$0x7]
      %v1799 = vld [vmem:[%s1795 + $0x10] sm:$0x8]
      %v1800 = vld [vmem:[%s1795 + $0x14] sm:$0xf]
      %v1801 = vld [vmem:[%s1795 + $0x18] sm:$0x7]
      %v1802 = vld [vmem:[%s1795 + $0x20] sm:$0x8]
      %v1803 = vld [vmem:[%s1795 + $0x24] sm:$0xf]
      %v1804 = vld [vmem:[%s1795 + $0x28] sm:$0x7]
      %v1805 = vld [vmem:[%s1795 + $0x30] sm:$0x8]
      %v1806 = vld [vmem:[%s1795 + $0x34] sm:$0xf]
      %v1807 = vld [vmem:[%s1795 + $0x38] sm:$0x7]
      %v1808 = vld [vmem:[%s1795 + $0x40] sm:$0x8]
      %v1809 = vld [vmem:[%s1795 + $0x44] sm:$0xf]
      %v1810 = vld [vmem:[%s1795 + $0x48] sm:$0x7]
      %v1811 = vld [vmem:[%s1795 + $0x50] sm:$0x8]
      %v1812 = vld [vmem:[%s1795 + $0x54] sm:$0xf]
      %v1813 = vld [vmem:[%s1795 + $0x58] sm:$0x7]
      %v1814 = vld [vmem:[%s1795 + $0x60] sm:$0x8]
      %v1815 = vld [vmem:[%s1795 + $0x64] sm:$0xf]
      %v1816 = vld [vmem:[%s1795 + $0x68] sm:$0x7]
      %v1817 = vld [vmem:[%s1795 + $0x70] sm:$0x8]
      %v1818 = vld [vmem:[%s1795 + $0x74] sm:$0xf]
      %v1819 = vld [vmem:[%s1795 + $0x78] sm:$0x7]
      %v1844 = vrot.slane %v1796, 7
      %v1845 = vrot.slane %v1844, 4
      %v1846 = vrot.slane %v1797, 7
      %v1847 = vsel %vm1033, %v1845, %v1846
      %v1848 = vrot.slane %v1846, 4
      %v1849 = vrot.slane %v1798, 7
      %v1850 = vsel %vm1033, %v1848, %v1849
      %v1851 = vrot.slane %v1799, 7
      %v1852 = vrot.slane %v1851, 4
      %v1853 = vrot.slane %v1800, 7
      %v1854 = vsel %vm1033, %v1852, %v1853
      %v1855 = vrot.slane %v1853, 4
      %v1856 = vrot.slane %v1801, 7
      %v1857 = vsel %vm1033, %v1855, %v1856
      %v1858 = vrot.slane %v1802, 7
      %v1859 = vrot.slane %v1858, 4
      %v1860 = vrot.slane %v1803, 7
      %v1861 = vsel %vm1033, %v1859, %v1860
      %v1862 = vrot.slane %v1860, 4
      %v1863 = vrot.slane %v1804, 7
      %v1864 = vsel %vm1033, %v1862, %v1863
      %v1865 = vrot.slane %v1805, 7
      %v1866 = vrot.slane %v1865, 4
      %v1867 = vrot.slane %v1806, 7
      %v1868 = vsel %vm1033, %v1866, %v1867
      %v1869 = vrot.slane %v1867, 4
      %v1870 = vrot.slane %v1807, 7
      %v1871 = vsel %vm1033, %v1869, %v1870
      %v1872 = vrot.slane %v1808, 7
      %v1873 = vrot.slane %v1872, 4
      %v1874 = vrot.slane %v1809, 7
      %v1875 = vsel %vm1033, %v1873, %v1874
      %v1876 = vrot.slane %v1874, 4
      %v1877 = vrot.slane %v1810, 7
      %v1878 = vsel %vm1033, %v1876, %v1877
      %v1879 = vrot.slane %v1811, 7
      %v1880 = vrot.slane %v1879, 4
      %v1881 = vrot.slane %v1812, 7
      %v1882 = vsel %vm1033, %v1880, %v1881
      %v1883 = vrot.slane %v1881, 4
      %v1884 = vrot.slane %v1813, 7
      %v1885 = vsel %vm1033, %v1883, %v1884
      %v1886 = vrot.slane %v1814, 7
      %v1887 = vrot.slane %v1886, 4
      %v1888 = vrot.slane %v1815, 7
      %v1889 = vsel %vm1033, %v1887, %v1888
      %v1890 = vrot.slane %v1888, 4
      %v1891 = vrot.slane %v1816, 7
      %v1892 = vsel %vm1033, %v1890, %v1891
      %v1893 = vrot.slane %v1817, 7
      %v1894 = vrot.slane %v1893, 4
      %v1895 = vrot.slane %v1818, 7
      %v1896 = vsel %vm1033, %v1894, %v1895
      %v1897 = vrot.slane %v1895, 4
      %v1898 = vrot.slane %v1819, 7
      %v1899 = vsel %vm1033, %v1897, %v1898
      %v1900 = vunpack.c.l.b16 %v1847
      %v1901 = vunpack.c.l.b16 %v1850
      %v1902 = vunpack.c.l.b16 %v1854
      %v1903 = vunpack.c.l.b16 %v1857
      %v1904 = vunpack.c.l.b16 %v1861
      %v1905 = vunpack.c.l.b16 %v1864
      %v1906 = vunpack.c.l.b16 %v1868
      %v1907 = vunpack.c.l.b16 %v1871
      %v1908 = vunpack.c.l.b16 %v1875
      %v1909 = vunpack.c.l.b16 %v1878
      %v1910 = vunpack.c.l.b16 %v1882
      %v1911 = vunpack.c.l.b16 %v1885
      %v1912 = vunpack.c.l.b16 %v1889
      %v1913 = vunpack.c.l.b16 %v1892
      %v1914 = vunpack.c.l.b16 %v1896
      %v1915 = vunpack.c.l.b16 %v1899
      %v1916 = vpack.c.b16 %v1901, %v1900
      %v1917 = vpack.c.b16 %v1903, %v1902
      %v1918 = vpack.c.b16 %v1905, %v1904
      %v1919 = vpack.c.b16 %v1907, %v1906
      %v1920 = vpack.c.b16 %v1909, %v1908
      %v1921 = vpack.c.b16 %v1911, %v1910
      %v1922 = vpack.c.b16 %v1913, %v1912
      %v1923 = vpack.c.b16 %v1915, %v1914
      %1924 = vrot.lane.b32.xlu0 %v1916, 24
      %v1925 = vpop.permute.xlu0 %1924
      %1926 = vrot.lane.b32.xlu0 %v1917, 24
      %v1927 = vpop.permute.xlu0 %1926
      %1928 = vrot.lane.b32.xlu0 %v1918, 24
      %v1929 = vpop.permute.xlu0 %1928
      %1930 = vrot.lane.b32.xlu0 %v1919, 24
      %v1931 = vpop.permute.xlu0 %1930
      %1932 = vrot.lane.b32.xlu0 %v1920, 24
      %v1933 = vpop.permute.xlu0 %1932
      %1934 = vrot.lane.b32.xlu0 %v1921, 24
      %v1935 = vpop.permute.xlu0 %1934
      %1936 = vrot.lane.b32.xlu0 %v1922, 24
      %v1937 = vpop.permute.xlu0 %1936
      %1938 = vrot.lane.b32.xlu0 %v1923, 24
      %v1939 = vpop.permute.xlu0 %1938
      %vm1948 = vcmask 228544
      %1949 = vst.msk [vmem:[#allocation3] sm:$0xff] %vm1948, %v1925
      %1950 = vst.msk [vmem:[#allocation3 + $0x8] sm:$0xff] %vm1948, %v1927
      %1951 = vst.msk [vmem:[#allocation3 + $0x10] sm:$0xff] %vm1948, %v1929
      %1952 = vst.msk [vmem:[#allocation3 + $0x18] sm:$0xff] %vm1948, %v1931
      %1953 = vst.msk [vmem:[#allocation3 + $0x20] sm:$0xff] %vm1948, %v1933
      %1954 = vst.msk [vmem:[#allocation3 + $0x28] sm:$0xff] %vm1948, %v1935
      %1955 = vst.msk [vmem:[#allocation3 + $0x30] sm:$0xff] %vm1948, %v1937
      %1956 = vst.msk [vmem:[#allocation3 + $0x38] sm:$0xff] %vm1948, %v1939
      %v1957 = vld [vmem:[%s1795 + $0x4] sm:$0xf]
      %v1958 = vld [vmem:[%s1795 + $0x8] sm:$0xf]
      %v1959 = vld [vmem:[%s1795 + $0x14] sm:$0xf]
      %v1960 = vld [vmem:[%s1795 + $0x18] sm:$0xf]
      %v1961 = vld [vmem:[%s1795 + $0x24] sm:$0xf]
      %v1962 = vld [vmem:[%s1795 + $0x28] sm:$0xf]
      %v1963 = vld [vmem:[%s1795 + $0x34] sm:$0xf]
      %v1964 = vld [vmem:[%s1795 + $0x38] sm:$0xf]
      %v1965 = vld [vmem:[%s1795 + $0x44] sm:$0xf]
      %v1966 = vld [vmem:[%s1795 + $0x48] sm:$0xf]
      %v1967 = vld [vmem:[%s1795 + $0x54] sm:$0xf]
      %v1968 = vld [vmem:[%s1795 + $0x58] sm:$0xf]
      %v1969 = vld [vmem:[%s1795 + $0x64] sm:$0xf]
      %v1970 = vld [vmem:[%s1795 + $0x68] sm:$0xf]
      %v1971 = vld [vmem:[%s1795 + $0x74] sm:$0xf]
      %v1972 = vld [vmem:[%s1795 + $0x78] sm:$0xf]
      %v1989 = vunpack.c.l.b16 %v1957
      %v1990 = vunpack.c.l.b16 %v1958
      %v1991 = vunpack.c.l.b16 %v1959
      %v1992 = vunpack.c.l.b16 %v1960
      %v1993 = vunpack.c.l.b16 %v1961
      %v1994 = vunpack.c.l.b16 %v1962
      %v1995 = vunpack.c.l.b16 %v1963
      %v1996 = vunpack.c.l.b16 %v1964
      %v1997 = vunpack.c.l.b16 %v1965
      %v1998 = vunpack.c.l.b16 %v1966
      %v1999 = vunpack.c.l.b16 %v1967
      %v2000 = vunpack.c.l.b16 %v1968
      %v2001 = vunpack.c.l.b16 %v1969
      %v2002 = vunpack.c.l.b16 %v1970
      %v2003 = vunpack.c.l.b16 %v1971
      %v2004 = vunpack.c.l.b16 %v1972
      %v2005 = vpack.c.b16 %v1990, %v1989
      %v2006 = vpack.c.b16 %v1992, %v1991
      %v2007 = vpack.c.b16 %v1994, %v1993
      %v2008 = vpack.c.b16 %v1996, %v1995
      %v2009 = vpack.c.b16 %v1998, %v1997
      %v2010 = vpack.c.b16 %v2000, %v1999
      %v2011 = vpack.c.b16 %v2002, %v2001
      %v2012 = vpack.c.b16 %v2004, %v2003
      %2013 = vrot.lane.b32.xlu0 %v2005, 28
      %v2014 = vpop.permute.xlu0 %2013
      %2015 = vrot.lane.b32.xlu0 %v2006, 28
      %v2016 = vpop.permute.xlu0 %2015
      %2017 = vrot.lane.b32.xlu0 %v2007, 28
      %v2018 = vpop.permute.xlu0 %2017
      %2019 = vrot.lane.b32.xlu0 %v2008, 28
      %v2020 = vpop.permute.xlu0 %2019
      %2021 = vrot.lane.b32.xlu0 %v2009, 28
      %v2022 = vpop.permute.xlu0 %2021
      %2023 = vrot.lane.b32.xlu0 %v2010, 28
      %v2024 = vpop.permute.xlu0 %2023
      %2025 = vrot.lane.b32.xlu0 %v2011, 28
      %v2026 = vpop.permute.xlu0 %2025
      %2027 = vrot.lane.b32.xlu0 %v2012, 28
      %v2028 = vpop.permute.xlu0 %2027
      %vm2037 = vcmask 261344
      %2038 = vst.msk [vmem:[#allocation3] sm:$0xff] %vm2037, %v2014
      %2039 = vst.msk [vmem:[#allocation3 + $0x8] sm:$0xff] %vm2037, %v2016
      %2040 = vst.msk [vmem:[#allocation3 + $0x10] sm:$0xff] %vm2037, %v2018
      %2041 = vst.msk [vmem:[#allocation3 + $0x18] sm:$0xff] %vm2037, %v2020
      %2042 = vst.msk [vmem:[#allocation3 + $0x20] sm:$0xff] %vm2037, %v2022
      %2043 = vst.msk [vmem:[#allocation3 + $0x28] sm:$0xff] %vm2037, %v2024
      %2044 = vst.msk [vmem:[#allocation3 + $0x30] sm:$0xff] %vm2037, %v2026
      %2045 = vst.msk [vmem:[#allocation3 + $0x38] sm:$0xff] %vm2037, %v2028
      %v2046 = vld [vmem:[%s1795 + $0x4] sm:$0xe]
      %v2047 = vld [vmem:[%s1795 + $0x8] sm:$0xf]
      %v2048 = vld [vmem:[%s1795 + $0xc] sm:$0x1]
      %v2049 = vld [vmem:[%s1795 + $0x14] sm:$0xe]
      %v2050 = vld [vmem:[%s1795 + $0x18] sm:$0xf]
      %v2051 = vld [vmem:[%s1795 + $0x1c] sm:$0x1]
      %v2052 = vld [vmem:[%s1795 + $0x24] sm:$0xe]
      %v2053 = vld [vmem:[%s1795 + $0x28] sm:$0xf]
      %v2054 = vld [vmem:[%s1795 + $0x2c] sm:$0x1]
      %v2055 = vld [vmem:[%s1795 + $0x34] sm:$0xe]
      %v2056 = vld [vmem:[%s1795 + $0x38] sm:$0xf]
      %v2057 = vld [vmem:[%s1795 + $0x3c] sm:$0x1]
      %v2058 = vld [vmem:[%s1795 + $0x44] sm:$0xe]
      %v2059 = vld [vmem:[%s1795 + $0x48] sm:$0xf]
      %v2060 = vld [vmem:[%s1795 + $0x4c] sm:$0x1]
      %v2061 = vld [vmem:[%s1795 + $0x54] sm:$0xe]
      %v2062 = vld [vmem:[%s1795 + $0x58] sm:$0xf]
      %v2063 = vld [vmem:[%s1795 + $0x5c] sm:$0x1]
      %v2064 = vld [vmem:[%s1795 + $0x64] sm:$0xe]
      %v2065 = vld [vmem:[%s1795 + $0x68] sm:$0xf]
      %v2066 = vld [vmem:[%s1795 + $0x6c] sm:$0x1]
      %v2067 = vld [vmem:[%s1795 + $0x74] sm:$0xe]
      %v2068 = vld [vmem:[%s1795 + $0x78] sm:$0xf]
      %v2069 = vld [vmem:[%s1795 + $0x7c] sm:$0x1]
      %v2094 = vrot.slane %v2046, 5
      %v2095 = vrot.slane %v2094, 4
      %v2096 = vrot.slane %v2047, 5
      %v2097 = vsel %vm1270, %v2095, %v2096
      %v2098 = vrot.slane %v2096, 4
      %v2099 = vrot.slane %v2048, 5
      %v2100 = vsel %vm1270, %v2098, %v2099
      %v2101 = vrot.slane %v2049, 5
      %v2102 = vrot.slane %v2101, 4
      %v2103 = vrot.slane %v2050, 5
      %v2104 = vsel %vm1270, %v2102, %v2103
      %v2105 = vrot.slane %v2103, 4
      %v2106 = vrot.slane %v2051, 5
      %v2107 = vsel %vm1270, %v2105, %v2106
      %v2108 = vrot.slane %v2052, 5
      %v2109 = vrot.slane %v2108, 4
      %v2110 = vrot.slane %v2053, 5
      %v2111 = vsel %vm1270, %v2109, %v2110
      %v2112 = vrot.slane %v2110, 4
      %v2113 = vrot.slane %v2054, 5
      %v2114 = vsel %vm1270, %v2112, %v2113
      %v2115 = vrot.slane %v2055, 5
      %v2116 = vrot.slane %v2115, 4
      %v2117 = vrot.slane %v2056, 5
      %v2118 = vsel %vm1270, %v2116, %v2117
      %v2119 = vrot.slane %v2117, 4
      %v2120 = vrot.slane %v2057, 5
      %v2121 = vsel %vm1270, %v2119, %v2120
      %v2122 = vrot.slane %v2058, 5
      %v2123 = vrot.slane %v2122, 4
      %v2124 = vrot.slane %v2059, 5
      %v2125 = vsel %vm1270, %v2123, %v2124
      %v2126 = vrot.slane %v2124, 4
      %v2127 = vrot.slane %v2060, 5
      %v2128 = vsel %vm1270, %v2126, %v2127
      %v2129 = vrot.slane %v2061, 5
      %v2130 = vrot.slane %v2129, 4
      %v2131 = vrot.slane %v2062, 5
      %v2132 = vsel %vm1270, %v2130, %v2131
      %v2133 = vrot.slane %v2131, 4
      %v2134 = vrot.slane %v2063, 5
      %v2135 = vsel %vm1270, %v2133, %v2134
      %v2136 = vrot.slane %v2064, 5
      %v2137 = vrot.slane %v2136, 4
      %v2138 = vrot.slane %v2065, 5
      %v2139 = vsel %vm1270, %v2137, %v2138
      %v2140 = vrot.slane %v2138, 4
      %v2141 = vrot.slane %v2066, 5
      %v2142 = vsel %vm1270, %v2140, %v2141
      %v2143 = vrot.slane %v2067, 5
      %v2144 = vrot.slane %v2143, 4
      %v2145 = vrot.slane %v2068, 5
      %v2146 = vsel %vm1270, %v2144, %v2145
      %v2147 = vrot.slane %v2145, 4
      %v2148 = vrot.slane %v2069, 5
      %v2149 = vsel %vm1270, %v2147, %v2148
      %v2150 = vunpack.c.l.b16 %v2097
      %v2151 = vunpack.c.l.b16 %v2100
      %v2152 = vunpack.c.l.b16 %v2104
      %v2153 = vunpack.c.l.b16 %v2107
      %v2154 = vunpack.c.l.b16 %v2111
      %v2155 = vunpack.c.l.b16 %v2114
      %v2156 = vunpack.c.l.b16 %v2118
      %v2157 = vunpack.c.l.b16 %v2121
      %v2158 = vunpack.c.l.b16 %v2125
      %v2159 = vunpack.c.l.b16 %v2128
      %v2160 = vunpack.c.l.b16 %v2132
      %v2161 = vunpack.c.l.b16 %v2135
      %v2162 = vunpack.c.l.b16 %v2139
      %v2163 = vunpack.c.l.b16 %v2142
      %v2164 = vunpack.c.l.b16 %v2146
      %v2165 = vunpack.c.l.b16 %v2149
      %v2166 = vpack.c.b16 %v2151, %v2150
      %v2167 = vpack.c.b16 %v2153, %v2152
      %v2168 = vpack.c.b16 %v2155, %v2154
      %v2169 = vpack.c.b16 %v2157, %v2156
      %v2170 = vpack.c.b16 %v2159, %v2158
      %v2171 = vpack.c.b16 %v2161, %v2160
      %v2172 = vpack.c.b16 %v2163, %v2162
      %v2173 = vpack.c.b16 %v2165, %v2164
      %2174 = vrot.lane.b32.xlu0 %v2166, 32
      %v2175 = vpop.permute.xlu0 %2174
      %2176 = vrot.lane.b32.xlu0 %v2167, 32
      %v2177 = vpop.permute.xlu0 %2176
      %2178 = vrot.lane.b32.xlu0 %v2168, 32
      %v2179 = vpop.permute.xlu0 %2178
      %2180 = vrot.lane.b32.xlu0 %v2169, 32
      %v2181 = vpop.permute.xlu0 %2180
      %2182 = vrot.lane.b32.xlu0 %v2170, 32
      %v2183 = vpop.permute.xlu0 %2182
      %2184 = vrot.lane.b32.xlu0 %v2171, 32
      %v2185 = vpop.permute.xlu0 %2184
      %2186 = vrot.lane.b32.xlu0 %v2172, 32
      %v2187 = vpop.permute.xlu0 %2186
      %2188 = vrot.lane.b32.xlu0 %v2173, 32
      %v2189 = vpop.permute.xlu0 %2188
      %vm2198 = vcmask 294144
      %2199 = vst.msk [vmem:[#allocation3] sm:$0xff] %vm2198, %v2175
      %2200 = vst.msk [vmem:[#allocation3 + $0x8] sm:$0xff] %vm2198, %v2177
      %2201 = vst.msk [vmem:[#allocation3 + $0x10] sm:$0xff] %vm2198, %v2179
      %2202 = vst.msk [vmem:[#allocation3 + $0x18] sm:$0xff] %vm2198, %v2181
      %2203 = vst.msk [vmem:[#allocation3 + $0x20] sm:$0xff] %vm2198, %v2183
      %2204 = vst.msk [vmem:[#allocation3 + $0x28] sm:$0xff] %vm2198, %v2185
      %2205 = vst.msk [vmem:[#allocation3 + $0x30] sm:$0xff] %vm2198, %v2187
      %2206 = vst.msk [vmem:[#allocation3 + $0x38] sm:$0xff] %vm2198, %v2189
      %v2207 = vld [vmem:[#allocation3] sm:$0xff]
      %v2208 = vld [vmem:[#allocation3 + $0x8] sm:$0xff]
      %v2209 = vld [vmem:[#allocation3 + $0x10] sm:$0xff]
      %v2210 = vld [vmem:[#allocation3 + $0x18] sm:$0xff]
      %v2211 = vld [vmem:[#allocation3 + $0x20] sm:$0xff]
      %v2212 = vld [vmem:[#allocation3 + $0x28] sm:$0xff]
      %v2213 = vld [vmem:[#allocation3 + $0x30] sm:$0xff]
      %v2214 = vld [vmem:[#allocation3 + $0x38] sm:$0xff]
      %v2215 = vld [vmem:[%s5] sm:$0xf]
      %v2216 = vld [vmem:[%s5 + $0x4] sm:$0xf]
      %v2217 = vld [vmem:[%s5 + $0x8] sm:$0xf]
      %v2218 = vld [vmem:[%s5 + $0xc] sm:$0xf]
      %v2219 = vld [vmem:[%s5 + $0x10] sm:$0x3]
      %v2220 = vld [vmem:[%s6] sm:$0x1]
      %v2222 = vlaneseq
      %v2223 = vshrl.u32 %v2222, 7
      %v2224 = vsub.s32 0, %v2223
      %v2225 = vrot.slane %v2220, %v2224
      %v2232 = vunpack.c.l.b16 %v2215
      %v2233 = vunpack.c.l.b16 %v2216
      %v2234 = vunpack.c.l.b16 %v2217
      %v2235 = vunpack.c.l.b16 %v2218
      %v2236 = vunpack.c.l.b16 %v2219
      %v2237 = vpack.c.b16 %v2233, %v2232
      %v2238 = vpack.c.b16 %v2235, %v2234
      %v2239 = vpack.c.b16 %v2236, %v2236
      %vm2242 = vcmask 293888
      %v2244 = vsel %vm2242, %v2207, 0
      %v2247 = vsel %vm2242, %v2208, 0
      %v2250 = vsel %vm2242, %v2209, 0
      %v2253 = vsel %vm2242, %v2210, 0
      %v2256 = vsel %vm2242, %v2211, 0
      %v2259 = vsel %vm2242, %v2212, 0
      %v2262 = vsel %vm2242, %v2213, 0
      %v2265 = vsel %vm2242, %v2214, 0
      %vm2267 = vcmask 1041408
      %v2269 = vsel %vm2267, %v2239, 0
      %2271 = vmatprep.subr.bf16.mxu0 0
      %2272 = vmatpush1.bf16.msra.mxu0 %v2237
      %2273 = vmatprep.subr.bf16.mxu0 0
      %2274 = vmatpush1.bf16.msra.mxu0 %v2238
      %2275 = vmatprep.subr.bf16.mxu0 0
      %2276 = vmatpush1.bf16.msra.mxu0 %v2269
      %2277 = vmatprep.subr.bf16.mxu0 0
      %2278 = vmatpush1.bf16.msra.mxu0 0
      %2279 = vmatprep.subr.bf16.mxu0 0
      %2280 = vmatpush1.bf16.msra.mxu0 0
      %2281 = vmatprep.subr.bf16.mxu0 0
      %2282 = vmatpush1.bf16.msra.mxu0 0
      %2283 = vmatprep.subr.bf16.mxu0 0
      %2284 = vmatpush1.bf16.msra.mxu0 0
      %2285 = vmatprep.subr.bf16.mxu0 0
      %2286 = vmatpush1.bf16.msra.mxu0 0
      %2287 = vmatprep.subr.bf16.mxu0 0
      %2288 = vmatpush1.bf16.msra.mxu0 0
      %2289 = vmatprep.subr.bf16.mxu0 0
      %2290 = vmatpush1.bf16.msra.mxu0 0
      %2291 = vmatprep.subr.bf16.mxu0 0
      %2292 = vmatpush1.bf16.msra.mxu0 0
      %2293 = vmatprep.subr.bf16.mxu0 0
      %2294 = vmatpush1.bf16.msra.mxu0 0
      %2295 = vmatprep.subr.bf16.mxu0 0
      %2296 = vmatpush1.bf16.msra.mxu0 0
      %2297 = vmatprep.subr.bf16.mxu0 0
      %2298 = vmatpush1.bf16.msra.mxu0 0
      %2299 = vmatprep.subr.bf16.mxu0 0
      %2300 = vmatpush1.bf16.msra.mxu0 0
      %2301 = vmatprep.subr.bf16.mxu0 0
      %2302 = vmatpush1.bf16.msra.mxu0 0
      %2303 = vmatprep.mubr.bf16.mxu0 0
      %2304 = vmatmul.mubr.bf16.gmra.mrb[0].mxu0 %v2244
      %v2305 = vpop.f32.mrb[0].mxu0
      %v2306 = vadd.f32 %v2225, %v2305
      %v2307 = vpop.f32.mrb[0].mxu0
      %v2308 = vpop.f32.mrb[0].mxu0
      %v2309 = vadd.f32 %v2225, %v2308
      %v2310 = vpop.f32.mrb[0].mxu0
      %2311 = vmatprep.mubr.bf16.mxu0 0
      %2312 = vmatmul.mubr.bf16.gmra.mrb[0].mxu0 %v2247
      %v2313 = vpop.f32.mrb[0].mxu0
      %v2314 = vadd.f32 %v2225, %v2313
      %v2315 = vpop.f32.mrb[0].mxu0
      %v2316 = vpop.f32.mrb[0].mxu0
      %v2317 = vadd.f32 %v2225, %v2316
      %v2318 = vpop.f32.mrb[0].mxu0
      %2319 = vmatprep.mubr.bf16.mxu0 0
      %2320 = vmatmul.mubr.bf16.gmra.mrb[0].mxu0 %v2250
      %v2321 = vpop.f32.mrb[0].mxu0
      %v2322 = vadd.f32 %v2225, %v2321
      %v2323 = vpop.f32.mrb[0].mxu0
      %v2324 = vpop.f32.mrb[0].mxu0
      %v2325 = vadd.f32 %v2225, %v2324
      %v2326 = vpop.f32.mrb[0].mxu0
      %2327 = vmatprep.mubr.bf16.mxu0 0
      %2328 = vmatmul.mubr.bf16.gmra.mrb[0].mxu0 %v2253
      %v2329 = vpop.f32.mrb[0].mxu0
      %v2330 = vadd.f32 %v2225, %v2329
      %v2331 = vpop.f32.mrb[0].mxu0
      %v2332 = vpop.f32.mrb[0].mxu0
      %v2333 = vadd.f32 %v2225, %v2332
      %v2334 = vpop.f32.mrb[0].mxu0
      %2335 = vmatprep.mubr.bf16.mxu0 0
      %2336 = vmatmul.mubr.bf16.gmra.mrb[0].mxu0 %v2256
      %v2337 = vpop.f32.mrb[0].mxu0
      %v2338 = vadd.f32 %v2225, %v2337
      %v2339 = vpop.f32.mrb[0].mxu0
      %v2340 = vpop.f32.mrb[0].mxu0
      %v2341 = vadd.f32 %v2225, %v2340
      %v2342 = vpop.f32.mrb[0].mxu0
      %2343 = vmatprep.mubr.bf16.mxu0 0
      %2344 = vmatmul.mubr.bf16.gmra.mrb[0].mxu0 %v2259
      %v2345 = vpop.f32.mrb[0].mxu0
      %v2346 = vadd.f32 %v2225, %v2345
      %v2347 = vpop.f32.mrb[0].mxu0
      %v2348 = vpop.f32.mrb[0].mxu0
      %v2349 = vadd.f32 %v2225, %v2348
      %v2350 = vpop.f32.mrb[0].mxu0
      %2351 = vmatprep.mubr.bf16.mxu0 0
      %2352 = vmatmul.mubr.bf16.gmra.mrb[0].mxu0 %v2262
      %v2353 = vpop.f32.mrb[0].mxu0
      %v2354 = vadd.f32 %v2225, %v2353
      %v2355 = vpop.f32.mrb[0].mxu0
      %v2356 = vpop.f32.mrb[0].mxu0
      %v2357 = vadd.f32 %v2225, %v2356
      %v2358 = vpop.f32.mrb[0].mxu0
      %2359 = vmatprep.mubr.bf16.mxu0 0
      %2360 = vmatmul.mubr.bf16.gmra.mrb[0].mxu0 %v2265
      %v2361 = vpop.f32.mrb[0].mxu0
      %v2362 = vadd.f32 %v2225, %v2361
      %v2363 = vpop.f32.mrb[0].mxu0
      %v2364 = vpop.f32.mrb[0].mxu0
      %v2365 = vadd.f32 %v2225, %v2364
      %v2366 = vpop.f32.mrb[0].mxu0
      %2367 = vdwg.mxu0
      %v2368 = vmax.f32 %v2306, 0.0
      %v2369 = vmax.f32 %v2309, 0.0
      %v2370 = vmax.f32 %v2314, 0.0
      %v2371 = vmax.f32 %v2317, 0.0
      %v2372 = vmax.f32 %v2322, 0.0
      %v2373 = vmax.f32 %v2325, 0.0
      %v2374 = vmax.f32 %v2330, 0.0
      %v2375 = vmax.f32 %v2333, 0.0
      %v2376 = vmax.f32 %v2338, 0.0
      %v2377 = vmax.f32 %v2341, 0.0
      %v2378 = vmax.f32 %v2346, 0.0
      %v2379 = vmax.f32 %v2349, 0.0
      %v2380 = vmax.f32 %v2354, 0.0
      %v2381 = vmax.f32 %v2357, 0.0
      %v2382 = vmax.f32 %v2362, 0.0
      %v2383 = vmax.f32 %v2365, 0.0
      %v2384 = vpack.c.bf16 %v2369, %v2368
      %v2385 = vpack.c.bf16 %v2371, %v2370
      %v2386 = vpack.c.bf16 %v2373, %v2372
      %v2387 = vpack.c.bf16 %v2375, %v2374
      %v2388 = vpack.c.bf16 %v2377, %v2376
      %v2389 = vpack.c.bf16 %v2379, %v2378
      %v2390 = vpack.c.bf16 %v2381, %v2380
      %v2391 = vpack.c.bf16 %v2383, %v2382
      %v2392 = vld [vmem:[%s7] sm:$0x3]
      %v2393 = vld [vmem:[%s8] sm:$0x1]
      %v2395 = vlaneseq
      %v2396 = vshrl.u32 %v2395, 7
      %v2397 = vsub.s32 0, %v2396
      %v2398 = vrot.slane %v2393, %v2397
      %v2401 = vsel %vm1122, %v2384, 0
      %v2404 = vsel %vm1122, %v2385, 0
      %v2407 = vsel %vm1122, %v2386, 0
      %v2410 = vsel %vm1122, %v2387, 0
      %v2413 = vsel %vm1122, %v2388, 0
      %v2416 = vsel %vm1122, %v2389, 0
      %v2419 = vsel %vm1122, %v2390, 0
      %v2422 = vsel %vm1122, %v2391, 0
      %v2425 = vsel %vm2267, %v2392, 0
      %2427 = vmatprep.subr.bf16.mxu0 0
      %2428 = vmatpush1.bf16.msra.mxu0 %v2425
      %2429 = vmatprep.subr.bf16.mxu0 0
      %2430 = vmatpush1.bf16.msra.mxu0 0
      %2431 = vmatprep.subr.bf16.mxu0 0
      %2432 = vmatpush1.bf16.msra.mxu0 0
      %2433 = vmatprep.subr.bf16.mxu0 0
      %2434 = vmatpush1.bf16.msra.mxu0 0
      %2435 = vmatprep.subr.bf16.mxu0 0
      %2436 = vmatpush1.bf16.msra.mxu0 0
      %2437 = vmatprep.subr.bf16.mxu0 0
      %2438 = vmatpush1.bf16.msra.mxu0 0
      %2439 = vmatprep.subr.bf16.mxu0 0
      %2440 = vmatpush1.bf16.msra.mxu0 0
      %2441 = vmatprep.subr.bf16.mxu0 0
      %2442 = vmatpush1.bf16.msra.mxu0 0
      %2443 = vmatprep.subr.bf16.mxu0 0
      %2444 = vmatpush1.bf16.msra.mxu0 0
      %2445 = vmatprep.subr.bf16.mxu0 0
      %2446 = vmatpush1.bf16.msra.mxu0 0
      %2447 = vmatprep.subr.bf16.mxu0 0
      %2448 = vmatpush1.bf16.msra.mxu0 0
      %2449 = vmatprep.subr.bf16.mxu0 0
      %2450 = vmatpush1.bf16.msra.mxu0 0
      %2451 = vmatprep.subr.bf16.mxu0 0
      %2452 = vmatpush1.bf16.msra.mxu0 0
      %2453 = vmatprep.subr.bf16.mxu0 0
      %2454 = vmatpush1.bf16.msra.mxu0 0
      %2455 = vmatprep.subr.bf16.mxu0 0
      %2456 = vmatpush1.bf16.msra.mxu0 0
      %2457 = vmatprep.subr.bf16.mxu0 0
      %2458 = vmatpush1.bf16.msra.mxu0 0
      %2459 = vmatprep.mubr.bf16.mxu0 0
      %2460 = vmatmul.mubr.bf16.gmra.mrb[0].mxu0 %v2401
      %v2461 = vpop.f32.mrb[0].mxu0
      %v2462 = vadd.f32 %v2398, %v2461
      %v2463 = vpop.f32.mrb[0].mxu0
      %v2464 = vpop.f32.mrb[0].mxu0
      %v2465 = vadd.f32 %v2398, %v2464
      %v2466 = vpop.f32.mrb[0].mxu0
      %2467 = vmatprep.mubr.bf16.mxu0 0
      %2468 = vmatmul.mubr.bf16.gmra.mrb[0].mxu0 %v2404
      %v2469 = vpop.f32.mrb[0].mxu0
      %v2470 = vadd.f32 %v2398, %v2469
      %v2471 = vpop.f32.mrb[0].mxu0
      %v2472 = vpop.f32.mrb[0].mxu0
      %v2473 = vadd.f32 %v2398, %v2472
      %v2474 = vpop.f32.mrb[0].mxu0
      %2475 = vmatprep.mubr.bf16.mxu0 0
      %2476 = vmatmul.mubr.bf16.gmra.mrb[0].mxu0 %v2407
      %v2477 = vpop.f32.mrb[0].mxu0
      %v2478 = vadd.f32 %v2398, %v2477
      %v2479 = vpop.f32.mrb[0].mxu0
      %v2480 = vpop.f32.mrb[0].mxu0
      %v2481 = vadd.f32 %v2398, %v2480
      %v2482 = vpop.f32.mrb[0].mxu0
      %2483 = vmatprep.mubr.bf16.mxu0 0
      %2484 = vmatmul.mubr.bf16.gmra.mrb[0].mxu0 %v2410
      %v2485 = vpop.f32.mrb[0].mxu0
      %v2486 = vadd.f32 %v2398, %v2485
      %v2487 = vpop.f32.mrb[0].mxu0
      %v2488 = vpop.f32.mrb[0].mxu0
      %v2489 = vadd.f32 %v2398, %v2488
      %v2490 = vpop.f32.mrb[0].mxu0
      %2491 = vmatprep.mubr.bf16.mxu0 0
      %2492 = vmatmul.mubr.bf16.gmra.mrb[0].mxu0 %v2413
      %v2493 = vpop.f32.mrb[0].mxu0
      %v2494 = vadd.f32 %v2398, %v2493
      %v2495 = vpop.f32.mrb[0].mxu0
      %v2496 = vpop.f32.mrb[0].mxu0
      %v2497 = vadd.f32 %v2398, %v2496
      %v2498 = vpop.f32.mrb[0].mxu0
      %2499 = vmatprep.mubr.bf16.mxu0 0
      %2500 = vmatmul.mubr.bf16.gmra.mrb[0].mxu0 %v2416
      %v2501 = vpop.f32.mrb[0].mxu0
      %v2502 = vadd.f32 %v2398, %v2501
      %v2503 = vpop.f32.mrb[0].mxu0
      %v2504 = vpop.f32.mrb[0].mxu0
      %v2505 = vadd.f32 %v2398, %v2504
      %v2506 = vpop.f32.mrb[0].mxu0
      %2507 = vmatprep.mubr.bf16.mxu0 0
      %2508 = vmatmul.mubr.bf16.gmra.mrb[0].mxu0 %v2419
      %v2509 = vpop.f32.mrb[0].mxu0
      %v2510 = vadd.f32 %v2398, %v2509
      %v2511 = vpop.f32.mrb[0].mxu0
      %v2512 = vpop.f32.mrb[0].mxu0
      %v2513 = vadd.f32 %v2398, %v2512
      %v2514 = vpop.f32.mrb[0].mxu0
      %2515 = vmatprep.mubr.bf16.mxu0 0
      %2516 = vmatmul.mubr.bf16.gmra.mrb[0].mxu0 %v2422
      %v2517 = vpop.f32.mrb[0].mxu0
      %v2518 = vadd.f32 %v2398, %v2517
      %v2519 = vpop.f32.mrb[0].mxu0
      %v2520 = vpop.f32.mrb[0].mxu0
      %v2521 = vadd.f32 %v2398, %v2520
      %v2522 = vpop.f32.mrb[0].mxu0
      %2523 = vdwg.mxu0
      %v2524 = vld [vmem:[%s479] sm:$0xff]
      %v2525 = vld [vmem:[%s479 + $0x8] sm:$0xff]
      %v2526 = vld [vmem:[%s479 + $0x10] sm:$0xff]
      %v2527 = vld [vmem:[%s479 + $0x18] sm:$0xff]
      %v2528 = vld [vmem:[%s479 + $0x20] sm:$0xff]
      %v2529 = vld [vmem:[%s479 + $0x28] sm:$0xff]
      %v2530 = vld [vmem:[%s479 + $0x30] sm:$0xff]
      %v2531 = vld [vmem:[%s479 + $0x38] sm:$0xff]
      %v2532 = vld [vmem:[%s479 + $0x40] sm:$0xff]
      %v2533 = vld [vmem:[%s479 + $0x48] sm:$0xff]
      %v2534 = vld [vmem:[%s479 + $0x50] sm:$0xff]
      %v2535 = vld [vmem:[%s479 + $0x58] sm:$0xff]
      %v2536 = vld [vmem:[%s479 + $0x60] sm:$0xff]
      %v2537 = vld [vmem:[%s479 + $0x68] sm:$0xff]
      %v2538 = vld [vmem:[%s479 + $0x70] sm:$0xff]
      %v2539 = vld [vmem:[%s479 + $0x78] sm:$0xff]
      %v2540 = vadd.f32 %v2462, %v2524
      %v2541 = vadd.f32 %v2465, %v2525
      %v2542 = vadd.f32 %v2470, %v2526
      %v2543 = vadd.f32 %v2473, %v2527
      %v2544 = vadd.f32 %v2478, %v2528
      %v2545 = vadd.f32 %v2481, %v2529
      %v2546 = vadd.f32 %v2486, %v2530
      %v2547 = vadd.f32 %v2489, %v2531
      %v2548 = vadd.f32 %v2494, %v2532
      %v2549 = vadd.f32 %v2497, %v2533
      %v2550 = vadd.f32 %v2502, %v2534
      %v2551 = vadd.f32 %v2505, %v2535
      %v2552 = vadd.f32 %v2510, %v2536
      %v2553 = vadd.f32 %v2513, %v2537
      %v2554 = vadd.f32 %v2518, %v2538
      %v2555 = vadd.f32 %v2521, %v2539
      %2556 = vst.msk [vmem:[%s509] sm:$0xff] %vm577, %v2540
      %2557 = vst.msk [vmem:[%s509 + $0x8] sm:$0xff] %vm577, %v2541
      %2558 = vst.msk [vmem:[%s509 + $0x10] sm:$0xff] %vm577, %v2542
      %2559 = vst.msk [vmem:[%s509 + $0x18] sm:$0xff] %vm577, %v2543
      %2560 = vst.msk [vmem:[%s509 + $0x20] sm:$0xff] %vm577, %v2544
      %2561 = vst.msk [vmem:[%s509 + $0x28] sm:$0xff] %vm577, %v2545
      %2562 = vst.msk [vmem:[%s509 + $0x30] sm:$0xff] %vm577, %v2546
      %2563 = vst.msk [vmem:[%s509 + $0x38] sm:$0xff] %vm577, %v2547
      %2564 = vst.msk [vmem:[%s509 + $0x40] sm:$0xff] %vm577, %v2548
      %2565 = vst.msk [vmem:[%s509 + $0x48] sm:$0xff] %vm577, %v2549
      %2566 = vst.msk [vmem:[%s509 + $0x50] sm:$0xff] %vm577, %v2550
      %2567 = vst.msk [vmem:[%s509 + $0x58] sm:$0xff] %vm577, %v2551
      %2568 = vst.msk [vmem:[%s509 + $0x60] sm:$0xff] %vm577, %v2552
      %2569 = vst.msk [vmem:[%s509 + $0x68] sm:$0xff] %vm577, %v2553
      %2570 = vst.msk [vmem:[%s509 + $0x70] sm:$0xff] %vm577, %v2554
      %2571 = vst.msk [vmem:[%s509 + $0x78] sm:$0xff] %vm577, %v2555
      %s2572 = smul.u32 8, %s25
      %p2573 = scmp.lt.s32.totalorder %s24, 1
      %s2574 = scalar_select %p2573, %s24, 1
      %p2575 = scmp.lt.s32.totalorder %s2572, 15
      %s2576 = scalar_select %p2575, %s2572, 15
      %s2577 = smul.addr %s2576, 2
      %s2578 = smul.addr %s2574, 32
      %s2579 = sadd.s32 %s2577, %s2578
      %s2580 = smul.addr %s2579, 8
      %s2581 = scalar_lea.vmem %s9, %s2580
      // Predicated region
      $region65: #{bottleneck_forward.1} parent=55 // pred_check
        %p2582 = pneg %p278
      $region66: #{bottleneck_forward.1} parent=55 // pred_check_branch
        %2584 = sbr.rel (%p2582) target = $region68
      $region67: #{bottleneck_forward.1} parent=55 // pred_region
        %s2585 = smul.u32 8, %s25
      $region68: #{bottleneck_forward.1} parent=55 // pred_fallthru
        _
    $region56: #{bottleneck_forward.1} parent=5 // pred_fallthru
      _
    %p2586 = scmp.le.s32.totalorder 2, %s15
    // Predicated region
    $region69: #{bottleneck_forward.1} parent=5 // pred_check
      %p2587 = pneg %p2586
    $region70: #{bottleneck_forward.1} parent=5 // pred_check_branch
      %2589 = sbr.rel (%p2587) target = $region72
    $region71: #{bottleneck_forward.1} parent=5 // pred_region
      %s2590 = ssub.s32 %s15, 2
      // Predicated region
      $region73: #{bottleneck_forward.1} parent=71 // pred_check
        %p2591 = pneg %p284
      $region74: #{bottleneck_forward.1} parent=71 // pred_check_branch
        %2593 = sbr.rel (%p2591) target = $region76
      $region75: #{bottleneck_forward.1} parent=71 // pred_region
        %s2594 = smul.u32 8, %s27
        %p2595 = scmp.lt.s32.totalorder %s26, 1
        %s2596 = scalar_select %p2595, %s26, 1
        %p2597 = scmp.lt.s32.totalorder %s2594, 15
        %s2598 = scalar_select %p2597, %s2594, 15
        %s2599 = smul.addr %s2598, 2
        %s2600 = smul.addr %s2596, 32
        %s2601 = sadd.s32 %s2599, %s2600
        %s2602 = smul.addr %s2601, 8
        %s2603 = scalar_lea.vmem %s9, %s2602
      $region76: #{bottleneck_forward.1} parent=71 // pred_fallthru
        _
    $region72: #{bottleneck_forward.1} parent=5 // pred_fallthru
      _
  $region6: #{bottleneck_forward.1} parent=0 // loop_footer
    %s19 = sadd.s32 1, %s15
  $region7: #{bottleneck_forward.1} parent=0 // loop_footer_branch
    %14 = sbr.rel target = $region3
  $region8: #{bottleneck_forward.1} parent=0 // loop_exit
    _

</llo_original>
